<compile_context>
chip_gen: v6e
topology: v6e:2x2x1
jax: 0.10.0
libtpu: 0.0.40
codegen_flags: <defaults>
</compile_context>

<pallas_src>
import functools

import jax
import jax.numpy as jnp
import numpy as np
from jax.experimental import pallas as pl
from jax.experimental.pallas import tpu as pltpu


# --------------------------------------------------------------------------
# Kernel
# --------------------------------------------------------------------------
def convnext_downscale_kernel(x_ref, pool_ref, exp_ref, wn_ref, ws_ref, b_ref,
                              o_ref, *, eps):
    # x_ref:    (K, TN)      transposed im2col patches of one batch element
    #                        (K = sf*sf*c_in rows, TN output pixels on lanes)
    # pool_ref: (P, K)  f32  per-kernel-position channel-mean matrix (1/C)
    # exp_ref:  (K, P)  f32  0/1 broadcast-back matrix
    # wn_ref:   (c_out, K) bf16  gamma-folded conv weight
    # ws_ref:   (c_out, K) f32   avg-pool + channel-mix skip weight
    # b_ref:    (c_out, 1) f32   conv bias with the LayerNorm beta term folded in
    # o_ref:    (c_out, TN)
    x = x_ref[...].astype(jnp.float32)                          # (K, TN)
    pool = pool_ref[...]
    exp = exp_ref[...]
    hi = jax.lax.Precision.HIGHEST                              # tiny dots only

    # Channel-only LayerNorm statistics on the MXU, lane-dense over pixels.
    # Centered variance: numerically stable and always >= 0 (ragged-tile
    # padding can no longer NaN the rsqrt).
    m1 = jnp.dot(pool, x, precision=hi,
                 preferred_element_type=jnp.float32)            # (P, TN) mean
    mean_b = jnp.dot(exp, m1, precision=hi,
                     preferred_element_type=jnp.float32)        # (K, TN)
    xc = x - mean_b
    var = jnp.dot(pool, xc * xc, precision=hi,
                  preferred_element_type=jnp.float32)           # (P, TN)
    r = jax.lax.rsqrt(var + eps)                                # (P, TN) rstd
    r_b = jnp.dot(exp, r, precision=hi,
                  preferred_element_type=jnp.float32)           # (K, TN)
    xn = (xc * r_b).astype(jnp.bfloat16)    # normalized; gamma/beta in w / b

    # Two dots into one f32 accumulator (no (2K, TN) concat copy):
    #   conv path  -> bf16 MXU, f32 accumulation
    #   skip path  -> f32 / HIGHEST (identity-like, keep it accurate; depth=K)
    acc = jnp.dot(wn_ref[...], xn, preferred_element_type=jnp.float32)
    acc = acc + jnp.dot(ws_ref[...], x, precision=hi,
                        preferred_element_type=jnp.float32)
    o_ref[...] = (acc + b_ref[...]).astype(o_ref.dtype)


# --------------------------------------------------------------------------
# Helpers (plain JAX / numpy glue)
# --------------------------------------------------------------------------
def make_channel_skip_matrix(c_in: int, c_out: int) -> np.ndarray:
    """Matrix M (c_in, c_out) s.t. skip_out = skip_in @ M reproduces
    SkipConnection.channel_skip (identity / mean-reduce / repeat paths)."""
    if c_in == c_out:
        return np.eye(c_in, dtype=np.float32)
    g = int(np.gcd(c_in, c_out))
    n_red = c_in // g
    n_rep = c_out // g
    reduce_m = np.zeros((c_in, g), np.float32)
    for i in range(c_in):
        reduce_m[i, i // n_red] = 1.0 / n_red
    repeat_m = np.zeros((g, c_out), np.float32)
    for j in range(c_out):
        repeat_m[j // n_rep, j] = 1.0
    return reduce_m @ repeat_m


def _round_up(a: int, m: int) -> int:
    return ((a + m - 1) // m) * m


def _pick_tile_pixels(np_pixels: int, batch: int, k: int, p: int, c_out: int,
                      itemsize: int,
                      vmem_budget: int = 26 * 1024 * 1024) -> int:
    """Pixel-tile size: biggest multiple of 128 whose double-buffered pipeline
    blocks *plus* the in-kernel f32 temporaries fit the budget (sized for
    v7x's 64 MiB/TC), capped at 16K pixels and clamped so the total grid keeps
    >= ~8 steps (two v7x TensorCores x >= 4 pipelined steps each)."""
    if np_pixels <= 128:
        return np_pixels                                  # block == full dim
    per_px = (2 * (k + c_out) * itemsize                  # double-buffered in/out blocks
              + 4 * k * 4 + k * 2                         # x, xc, mean_b, r_b (f32) + xn (bf16)
              + 3 * p * 4 + 2 * c_out * 4)                # m1/var/r + acc / out staging
    t = vmem_budget // max(per_px, 1)
    t = min(t, 16 * 1024)
    min_tiles = max(2, -(-8 // max(batch, 1)))            # ceil(8 / B), >= 2
    t = min(t, _round_up(-(-np_pixels // min_tiles), 128))
    return max(128, (t // 128) * 128)


def convnext_downscale(x, conv_w, conv_b, ln_gamma, ln_beta,
                       spatial_factor: int):
    """x: (B, c_in, H, W) NCHW. Returns (B, c_out, H//sf, W//sf)."""
    B, C, H, W = x.shape
    sf = int(spatial_factor)
    c_out = conv_w.shape[0]
    assert H % sf == 0 and W % sf == 0
    Ho, Wo = H // sf, W // sf
    P = sf * sf
    K = P * C
    Np = Ho * Wo                                  # output pixels per batch elem

    # ---- batch-major transposed im2col: (B,C,H,W) -> (B, K, Np);
    # row r = (kh*sf+kw)*C + c, column = ho*Wo + wo.  Keeping batch leading
    # means each (c_out, TN) kernel tile is already an NCHW tile, so the
    # (B, c_out, Np) result reshapes to NCHW for free (no output transpose).
    # TODO(synk): replace this XLA transpose with an in-kernel DMA gather
    # (memory_space=pl.ANY + sf-strided async copies) to remove the remaining
    # input-sized HBM pass; allow_input_fusion below lets XLA fuse it meanwhile.
    xv = x.reshape(B, C, Ho, sf, Wo, sf)
    x_t = jnp.transpose(xv, (0, 3, 5, 1, 2, 4)).reshape(B, K, Np)

    # ---- fold gamma into the conv weight, flatten to (c_out, K), bf16 for MXU
    wn = jnp.transpose(conv_w, (0, 2, 3, 1)) * ln_gamma.reshape(1, 1, 1, C)
    wn = wn.reshape(c_out, K).astype(jnp.bfloat16)

    # ---- skip path: spatial mean pool (1/P) + channel reduce/repeat, f32
    skip_mat = jnp.asarray(make_channel_skip_matrix(C, c_out))       # (C, c_out)
    ws = jnp.tile(jnp.transpose(skip_mat) / float(P),
                  (1, P)).astype(jnp.float32)                        # (c_out, K)

    # conv bias with the LayerNorm beta term folded in
    b_col = (conv_b.astype(jnp.float32)
             + jnp.sum(conv_w, axis=(2, 3)).astype(jnp.float32)
             @ ln_beta.astype(jnp.float32)).reshape(c_out, 1)

    # constant LayerNorm pooling / broadcast matrices (exact 1/C and 0/1)
    pool_mat = jnp.asarray(
        np.kron(np.eye(P, dtype=np.float32),
                np.full((1, C), 1.0 / C, np.float32)))               # (P, K)
    exp_mat = jnp.asarray(
        np.kron(np.eye(P, dtype=np.float32),
                np.ones((C, 1), np.float32)))                        # (K, P)

    tile_n = _pick_tile_pixels(Np, B, K, P, c_out,
                               jnp.dtype(x.dtype).itemsize)
    grid = (B, pl.cdiv(Np, tile_n))

    out = pl.pallas_call(
        functools.partial(convnext_downscale_kernel, eps=1e-6),
        out_shape=jax.ShapeDtypeStruct((B, c_out, Np), x.dtype),
        grid_spec=pltpu.PrefetchScalarGridSpec(
            num_scalar_prefetch=0,
            grid=grid,
            in_specs=[
                pl.BlockSpec((None, K, tile_n), lambda b, n: (b, 0, n)),  # x_T
                pl.BlockSpec((P, K), lambda b, n: (0, 0)),                # pool
                pl.BlockSpec((K, P), lambda b, n: (0, 0)),                # expand
                pl.BlockSpec((c_out, K), lambda b, n: (0, 0)),            # conv w
                pl.BlockSpec((c_out, K), lambda b, n: (0, 0)),            # skip w
                pl.BlockSpec((c_out, 1), lambda b, n: (0, 0)),            # bias
            ],
            out_specs=pl.BlockSpec((None, c_out, tile_n),
                                   lambda b, n: (b, 0, n)),
        ),
        compiler_params=pltpu.CompilerParams(
            dimension_semantics=("parallel", "parallel"),
            vmem_limit_bytes=44 * 1024 * 1024,
            allow_input_fusion=[True, False, False, False, False, False]),
    )(x_t, pool_mat, exp_mat, wn, ws, b_col)

    # (B, c_out, Np) -> (B, c_out, Ho, Wo): pure reshape, no transpose pass.
    return out.reshape(B, c_out, Ho, Wo)


# --------------------------------------------------------------------------
# Pure-JAX reference (mirrors the PyTorch module semantics) for verification
# --------------------------------------------------------------------------
def reference(x, conv_w, conv_b, gamma, beta, sf):
    B, C, H, W = x.shape
    c_out = conv_w.shape[0]
    # skip: spatial mean pool then channel mix
    s = x.reshape(B, C, H // sf, sf, W // sf, sf).mean(axis=(3, 5))   # (B,C,Ho,Wo)
    M = jnp.asarray(make_channel_skip_matrix(C, c_out))
    skip = jnp.einsum('bchw,co->bohw', s, M)
    # LayerNorm over channels
    xt = jnp.transpose(x, (0, 2, 3, 1))
    mean = xt.mean(-1, keepdims=True)
    var = ((xt - mean) ** 2).mean(-1, keepdims=True)
    xn = (xt - mean) / jnp.sqrt(var + 1e-6) * gamma + beta
    xn = jnp.transpose(xn, (0, 3, 1, 2))
    conv = jax.lax.conv_general_dilated(
        xn, conv_w, (sf, sf), 'VALID',
        dimension_numbers=('NCHW', 'OIHW', 'NCHW'),
        precision=jax.lax.Precision.HIGHEST) + conv_b.reshape(1, -1, 1, 1)
    return conv + skip


# --------------------------------------------------------------------------
if __name__ == "__main__":
    key = jax.random.PRNGKey(0)
    k1, k2, k3, k4, k5 = jax.random.split(key, 5)

    B, c_in, c_out, sf, H, W = 2, 4, 8, 2, 16, 16
    x = jax.random.normal(k1, (B, c_in, H, W), jnp.float32)
    conv_w = 0.1 * jax.random.normal(k2, (c_out, c_in, sf, sf), jnp.float32)
    conv_b = 0.1 * jax.random.normal(k3, (c_out,), jnp.float32)
    gamma = 1.0 + 0.1 * jax.random.normal(k4, (c_in,), jnp.float32)
    beta = 0.1 * jax.random.normal(k5, (c_in,), jnp.float32)

    out = convnext_downscale(x, conv_w, conv_b, gamma, beta, sf)
    out = jax.block_until_ready(out)

    assert out.shape == (B, c_out, H // sf, W // sf)
    ref = reference(x, conv_w, conv_b, gamma, beta, sf)
    # conv path runs in bf16 (f32 accumulation); skip path is f32/HIGHEST
    np.testing.assert_allclose(np.asarray(out), np.asarray(ref),
                               rtol=2e-2, atol=2e-2)
    print("KERNEL_OK")
</pallas_src>

<mosaic_0001>
module attributes {stable_mosaic.version = 11 : i64} {
  func.func @convnext_downscale_kernel(%arg0: i32, %arg1: i32, %arg2: memref<1x16x64xf32, #tpu.memory_space<vmem>>, %arg3: memref<4x16xf32, #tpu.memory_space<vmem>>, %arg4: memref<16x4xf32, #tpu.memory_space<vmem>>, %arg5: memref<8x16xbf16, #tpu.memory_space<vmem>>, %arg6: memref<8x16xf32, #tpu.memory_space<vmem>>, %arg7: memref<8x1xf32, #tpu.memory_space<vmem>>, %arg8: memref<1x8x64xf32, #tpu.memory_space<vmem>>) attributes {dimension_semantics = [#tpu.dimension_semantics<parallel>, #tpu.dimension_semantics<parallel>], iteration_bounds = array<i64: 2, 1>, scalar_prefetch = 0 : i64, scratch_operands = 0 : i64, tpu.core_type = #tpu.core_type<tc>, window_params = [{transform_indices = @transform_0, window_bounds = array<i64: 1, 16, 64>}, {pipeline_mode = #tpu.pipeline_mode<synchronous>, transform_indices = @transform_1, window_bounds = array<i64: 4, 16>}, {pipeline_mode = #tpu.pipeline_mode<synchronous>, transform_indices = @transform_2, window_bounds = array<i64: 16, 4>}, {pipeline_mode = #tpu.pipeline_mode<synchronous>, transform_indices = @transform_3, window_bounds = array<i64: 8, 16>}, {pipeline_mode = #tpu.pipeline_mode<synchronous>, transform_indices = @transform_4, window_bounds = array<i64: 8, 16>}, {pipeline_mode = #tpu.pipeline_mode<synchronous>, transform_indices = @transform_5, window_bounds = array<i64: 8, 1>}, {transform_indices = @transform_6, window_bounds = array<i64: 1, 8, 64>}]} {
    %c0 = arith.constant 0 : index
    %c0_0 = arith.constant 0 : index
    %c0_1 = arith.constant 0 : index
    %0 = vector.load %arg2[%c0, %c0_0, %c0_1] : memref<1x16x64xf32, #tpu.memory_space<vmem>>, vector<1x16x64xf32>
    %1 = vector.shape_cast %0 : vector<1x16x64xf32> to vector<16x64xf32>
    %c0_2 = arith.constant 0 : index
    %c0_3 = arith.constant 0 : index
    %2 = vector.load %arg3[%c0_2, %c0_3] : memref<4x16xf32, #tpu.memory_space<vmem>>, vector<4x16xf32>
    %c0_4 = arith.constant 0 : index
    %c0_5 = arith.constant 0 : index
    %3 = vector.load %arg4[%c0_4, %c0_5] : memref<16x4xf32, #tpu.memory_space<vmem>>, vector<16x4xf32>
    %cst = arith.constant dense<0.000000e+00> : vector<4x64xf32>
    %4 = tpu.matmul %2, %1, %cst {dimension_numbers = #tpu.dot_dimension_numbers<[1], [0], [0], [1], [0, 0, 1, 1], [], []>, precision = #tpu.contract_precision<fp32>} : vector<4x16xf32>, vector<16x64xf32>, vector<4x64xf32> -> vector<4x64xf32>
    %cst_6 = arith.constant dense<0.000000e+00> : vector<16x64xf32>
    %5 = tpu.matmul %3, %4, %cst_6 {dimension_numbers = #tpu.dot_dimension_numbers<[1], [0], [0], [1], [0, 0, 1, 1], [], []>, precision = #tpu.contract_precision<fp32>} : vector<16x4xf32>, vector<4x64xf32>, vector<16x64xf32> -> vector<16x64xf32>
    %6 = arith.subf %1, %5 : vector<16x64xf32>
    %7 = arith.mulf %6, %6 : vector<16x64xf32>
    %cst_7 = arith.constant dense<0.000000e+00> : vector<4x64xf32>
    %8 = tpu.matmul %2, %7, %cst_7 {dimension_numbers = #tpu.dot_dimension_numbers<[1], [0], [0], [1], [0, 0, 1, 1], [], []>, precision = #tpu.contract_precision<fp32>} : vector<4x16xf32>, vector<16x64xf32>, vector<4x64xf32> -> vector<4x64xf32>
    %cst_8 = arith.constant 9.99999997E-7 : f32
    %9 = vector.broadcast %cst_8 : f32 to vector<4x64xf32>
    %10 = arith.addf %8, %9 : vector<4x64xf32>
    %11 = math.rsqrt %10 : vector<4x64xf32>
    %cst_9 = arith.constant dense<0.000000e+00> : vector<16x64xf32>
    %12 = tpu.matmul %3, %11, %cst_9 {dimension_numbers = #tpu.dot_dimension_numbers<[1], [0], [0], [1], [0, 0, 1, 1], [], []>, precision = #tpu.contract_precision<fp32>} : vector<16x4xf32>, vector<4x64xf32>, vector<16x64xf32> -> vector<16x64xf32>
    %13 = arith.mulf %6, %12 : vector<16x64xf32>
    %14 = arith.truncf %13 : vector<16x64xf32> to vector<16x64xbf16>
    %c0_10 = arith.constant 0 : index
    %c0_11 = arith.constant 0 : index
    %15 = vector.load %arg5[%c0_10, %c0_11] : memref<8x16xbf16, #tpu.memory_space<vmem>>, vector<8x16xbf16>
    %cst_12 = arith.constant dense<0.000000e+00> : vector<8x64xf32>
    %16 = tpu.matmul %15, %14, %cst_12 {dimension_numbers = #tpu.dot_dimension_numbers<[1], [0], [0], [1], [0, 0, 1, 1], [], []>} : vector<8x16xbf16>, vector<16x64xbf16>, vector<8x64xf32> -> vector<8x64xf32>
    %c0_13 = arith.constant 0 : index
    %c0_14 = arith.constant 0 : index
    %17 = vector.load %arg6[%c0_13, %c0_14] : memref<8x16xf32, #tpu.memory_space<vmem>>, vector<8x16xf32>
    %cst_15 = arith.constant dense<0.000000e+00> : vector<8x64xf32>
    %18 = tpu.matmul %17, %1, %cst_15 {dimension_numbers = #tpu.dot_dimension_numbers<[1], [0], [0], [1], [0, 0, 1, 1], [], []>, precision = #tpu.contract_precision<fp32>} : vector<8x16xf32>, vector<16x64xf32>, vector<8x64xf32> -> vector<8x64xf32>
    %19 = arith.addf %16, %18 : vector<8x64xf32>
    %c0_16 = arith.constant 0 : index
    %c0_17 = arith.constant 0 : index
    %20 = vector.load %arg7[%c0_16, %c0_17] : memref<8x1xf32, #tpu.memory_space<vmem>>, vector<8x1xf32>
    %21 = vector.broadcast %20 : vector<8x1xf32> to vector<8x64xf32>
    %22 = arith.addf %19, %21 : vector<8x64xf32>
    %c0_18 = arith.constant 0 : index
    %c0_19 = arith.constant 0 : index
    %c0_20 = arith.constant 0 : index
    %23 = vector.load %arg8[%c0_18, %c0_19, %c0_20] : memref<1x8x64xf32, #tpu.memory_space<vmem>>, vector<1x8x64xf32>
    %24 = vector.shape_cast %23 : vector<1x8x64xf32> to vector<8x64xf32>
    %25 = vector.shape_cast %22 : vector<8x64xf32> to vector<1x8x64xf32>
    tpu.vector_store %arg8[%c0_18, %c0_19, %c0_20], %25 {strides = array<i32>} : memref<1x8x64xf32, #tpu.memory_space<vmem>>, vector<1x8x64xf32>,
    return
  }
  func.func @transform_0(%arg0: i32, %arg1: i32) -> (i32, i32, i32) {
    %c0_i32 = arith.constant 0 : i32
    %c0_i32_0 = arith.constant 0 : i32
    return %arg0, %c0_i32, %arg1 : i32, i32, i32
  }
  func.func @transform_1(%arg0: i32, %arg1: i32) -> (i32, i32) {
    %c0_i32 = arith.constant 0 : i32
    %c0_i32_0 = arith.constant 0 : i32
    %c0_i32_1 = arith.constant 0 : i32
    return %c0_i32, %c0_i32_0 : i32, i32
  }
  func.func @transform_2(%arg0: i32, %arg1: i32) -> (i32, i32) {
    %c0_i32 = arith.constant 0 : i32
    %c0_i32_0 = arith.constant 0 : i32
    %c0_i32_1 = arith.constant 0 : i32
    return %c0_i32, %c0_i32_0 : i32, i32
  }
  func.func @transform_3(%arg0: i32, %arg1: i32) -> (i32, i32) {
    %c0_i32 = arith.constant 0 : i32
    %c0_i32_0 = arith.constant 0 : i32
    %c0_i32_1 = arith.constant 0 : i32
    return %c0_i32, %c0_i32_0 : i32, i32
  }
  func.func @transform_4(%arg0: i32, %arg1: i32) -> (i32, i32) {
    %c0_i32 = arith.constant 0 : i32
    %c0_i32_0 = arith.constant 0 : i32
    %c0_i32_1 = arith.constant 0 : i32
    return %c0_i32, %c0_i32_0 : i32, i32
  }
  func.func @transform_5(%arg0: i32, %arg1: i32) -> (i32, i32) {
    %c0_i32 = arith.constant 0 : i32
    %c0_i32_0 = arith.constant 0 : i32
    %c0_i32_1 = arith.constant 0 : i32
    return %c0_i32, %c0_i32_0 : i32, i32
  }
  func.func @transform_6(%arg0: i32, %arg1: i32) -> (i32, i32, i32) {
    %c0_i32 = arith.constant 0 : i32
    %c0_i32_0 = arith.constant 0 : i32
    return %arg0, %c0_i32, %arg1 : i32, i32, i32
  }
}

</mosaic_0001>

<llo_original>
// kernel: tpu_custom_call.1
$region0: #{tpu_custom_call.1}
  #allocation0 [shape = 'u32[]', space=smem, size = 0x4, offset = 0x4, fixed_abs, tag = 'smem constant byte address 0x4 - core index']
  #allocation1 [shape = 'u32[144,128]{1,0:T(1,128)}', space=vmem, size = 0x12000, scoped, tag = 'internal scratch']
  %s0 = inlined_call_operand.hbm [shape: f32[2,16,64], index: 0, kind: input, shape index: {}]
  %s1 = inlined_call_operand.vmem [shape: f32[4,16], index: 1, kind: input, shape index: {}]
  %s2 = inlined_call_operand.vmem [shape: f32[16,4], index: 2, kind: input, shape index: {}]
  %s3 = inlined_call_operand.vmem [shape: bf16[8,16], index: 3, kind: input, shape index: {}]
  %s4 = inlined_call_operand.vmem [shape: f32[8,16], index: 4, kind: input, shape index: {}]
  %s5 = inlined_call_operand.vmem [shape: f32[8,1], index: 5, kind: input, shape index: {}]
  %s6 = inlined_call_operand.hbm [shape: f32[2,8,64], index: 6, kind: output, shape index: {}]
  %s7 = sld [smem:[#allocation0]]
  $region61: #{tpu_custom_call.1} parent=0
    _
  %s9 = ssub.s32 1, %s7
  %s10 = scalar_select 0, %s9, %s7
  $region1: #{tpu_custom_call.1} parent=0
    #allocation2 [shape = 'u8[16384]{0}', space=vmem, size = 0x4000, scoped, tag = 'input window, operand 0']
    #allocation3 [shape = 's32[2]{0}', space=sflag, size = 0x8, scoped, tag = 'scoped memory for tpu_custom_call.1']
    #allocation4 [shape = 's32[2]{0}', space=sflag, size = 0x8, scoped, tag = 'scoped memory for tpu_custom_call.1']
    #allocation5 [shape = 'u8[8192]{0}', space=vmem, size = 0x2000, scoped, tag = 'output window, operand 0']
    %11 = vsyncpa [#allocation3], 0
    %s12 = scalar_lea.sflag [#allocation3], 1
    %13 = vsyncpa %s12, 0
    %14 = vsyncpa [#allocation4], 0
    %s15 = scalar_lea.sflag [#allocation4], 1
    %16 = vsyncpa %s15, 0
    loop: start=0, step=1, limit=4
    $region2: #{tpu_custom_call.1} parent=1 // loop_pre_header
      _
    $region3: #{tpu_custom_call.1} parent=1 // loop_header
      %s18 = sphi 0, %s22
      %p19 = scmp.ge.s32.totalorder %s18, 4
      %s25 = sphi 0, %s37
      %s26 = sphi 0, %s33
      %s27 = sphi 0, %s25
      %s28 = sphi 0, %s26
      %s29 = sphi 0, %s27
      %s30 = sphi 0, %s28
      %s42 = sphi 0, %s44
      %s45 = sphi 0, %s42
      %s46 = sphi 0, %s45
      %s62 = sphi 0, %s46
      %s66 = sphi 0, %s66
      %s68 = sphi 0, %s66
      %s69 = sphi 0, %s68
      %s83 = sphi 0, %s69
      %s87 = sphi 0, %s87
      %s89 = sphi 0, %s87
      %s90 = sphi 0, %s89
      %s104 = sphi 0, %s90
      %s108 = sphi 0, %s108
      %s110 = sphi 0, %s108
      %s111 = sphi 0, %s110
      %s125 = sphi 0, %s111
      %s129 = sphi 0, %s129
      %s131 = sphi 0, %s129
      %s132 = sphi 0, %s131
      %s146 = sphi 0, %s132
      %s150 = sphi 0, %s150
      %s152 = sphi 0, %s150
      %s153 = sphi 0, %s152
      %s167 = sphi 0, %s153
      %s175 = sphi 0, %s177
      %s178 = sphi 0, %s175
      %s179 = sphi 0, %s178
      %s195 = sphi 0, %s179
    $region4: #{tpu_custom_call.1} parent=1 // loop_header_branch
      %21 = sbr.rel (%p19) target = $region8
    $region5: #{tpu_custom_call.1} parent=1 // loop_body
      %s23 = ssub.s32 %s18, 1
      %s24 = ssub.s32 %s18, 2
      %s31 = sadd.s32 1, %s26
      %p32 = scmp.ge.s32.totalorder %s31, 1
      %s33 = scalar_select %p32, 0, %s31
      %s34 = sadd.s32 1, %s25
      %s35 = scalar_select %p32, %s34, %s25
      %p36 = scmp.ge.s32.totalorder %s35, 2
      %s37 = scalar_select %p36, 0, %s35
      %s38 = ssub.s32 %s25, %s37
      %s39 = ssub.s32 %s26, %s33
      %s40 = sor.u32 %s38, %s39
      %p41 = scmp.eq.s32.totalorder %s40, 0
      %s43 = sadd.s32 %s42, 1
      %s44 = scalar_select %p41, %s42, %s43
      %p47 = pneg %p41
      %p48 = scmp.eq.s32.totalorder %s18, 1
      %p49 = por %p47, %p48
      %p50 = scmp.ne.s32.totalorder %s42, %s45
      %p51 = scmp.eq.s32.totalorder %s18, 0
      %p52 = por %p50, %p51
      %p53 = scmp.ne.s32.totalorder %s42, %s45
      %p54 = scmp.eq.s32.totalorder %s23, 1
      %p55 = por %p53, %p54
      %p56 = scmp.ne.s32.totalorder %s45, %s46
      %p57 = scmp.eq.s32.totalorder %s23, 0
      %p58 = por %p56, %p57
      %p59 = scmp.ne.s32.totalorder %s45, %s46
      %p60 = scmp.eq.s32.totalorder %s24, 1
      %p61 = por %p59, %p60
      %p63 = scmp.ne.s32.totalorder %s46, %s62
      %p64 = scmp.eq.s32.totalorder %s24, 0
      %p65 = por %p63, %p64
      %s67 = sadd.s32 %s66, 1
      %p70 = scmp.eq.s32.totalorder %s18, 1
      %p71 = scmp.ne.s32.totalorder %s66, %s68
      %p72 = scmp.eq.s32.totalorder %s18, 0
      %p73 = por %p71, %p72
      %p74 = scmp.ne.s32.totalorder %s66, %s68
      %p75 = scmp.eq.s32.totalorder %s23, 1
      %p76 = por %p74, %p75
      %p77 = scmp.ne.s32.totalorder %s68, %s69
      %p78 = scmp.eq.s32.totalorder %s23, 0
      %p79 = por %p77, %p78
      %p80 = scmp.ne.s32.totalorder %s68, %s69
      %p81 = scmp.eq.s32.totalorder %s24, 1
      %p82 = por %p80, %p81
      %p84 = scmp.ne.s32.totalorder %s69, %s83
      %p85 = scmp.eq.s32.totalorder %s24, 0
      %p86 = por %p84, %p85
      %s88 = sadd.s32 %s87, 1
      %p91 = scmp.eq.s32.totalorder %s18, 1
      %p92 = scmp.ne.s32.totalorder %s87, %s89
      %p93 = scmp.eq.s32.totalorder %s18, 0
      %p94 = por %p92, %p93
      %p95 = scmp.ne.s32.totalorder %s87, %s89
      %p96 = scmp.eq.s32.totalorder %s23, 1
      %p97 = por %p95, %p96
      %p98 = scmp.ne.s32.totalorder %s89, %s90
      %p99 = scmp.eq.s32.totalorder %s23, 0
      %p100 = por %p98, %p99
      %p101 = scmp.ne.s32.totalorder %s89, %s90
      %p102 = scmp.eq.s32.totalorder %s24, 1
      %p103 = por %p101, %p102
      %p105 = scmp.ne.s32.totalorder %s90, %s104
      %p106 = scmp.eq.s32.totalorder %s24, 0
      %p107 = por %p105, %p106
      %s109 = sadd.s32 %s108, 1
      %p112 = scmp.eq.s32.totalorder %s18, 1
      %p113 = scmp.ne.s32.totalorder %s108, %s110
      %p114 = scmp.eq.s32.totalorder %s18, 0
      %p115 = por %p113, %p114
      %p116 = scmp.ne.s32.totalorder %s108, %s110
      %p117 = scmp.eq.s32.totalorder %s23, 1
      %p118 = por %p116, %p117
      %p119 = scmp.ne.s32.totalorder %s110, %s111
      %p120 = scmp.eq.s32.totalorder %s23, 0
      %p121 = por %p119, %p120
      %p122 = scmp.ne.s32.totalorder %s110, %s111
      %p123 = scmp.eq.s32.totalorder %s24, 1
      %p124 = por %p122, %p123
      %p126 = scmp.ne.s32.totalorder %s111, %s125
      %p127 = scmp.eq.s32.totalorder %s24, 0
      %p128 = por %p126, %p127
      %s130 = sadd.s32 %s129, 1
      %p133 = scmp.eq.s32.totalorder %s18, 1
      %p134 = scmp.ne.s32.totalorder %s129, %s131
      %p135 = scmp.eq.s32.totalorder %s18, 0
      %p136 = por %p134, %p135
      %p137 = scmp.ne.s32.totalorder %s129, %s131
      %p138 = scmp.eq.s32.totalorder %s23, 1
      %p139 = por %p137, %p138
      %p140 = scmp.ne.s32.totalorder %s131, %s132
      %p141 = scmp.eq.s32.totalorder %s23, 0
      %p142 = por %p140, %p141
      %p143 = scmp.ne.s32.totalorder %s131, %s132
      %p144 = scmp.eq.s32.totalorder %s24, 1
      %p145 = por %p143, %p144
      %p147 = scmp.ne.s32.totalorder %s132, %s146
      %p148 = scmp.eq.s32.totalorder %s24, 0
      %p149 = por %p147, %p148
      %s151 = sadd.s32 %s150, 1
      %p154 = scmp.eq.s32.totalorder %s18, 1
      %p155 = scmp.ne.s32.totalorder %s150, %s152
      %p156 = scmp.eq.s32.totalorder %s18, 0
      %p157 = por %p155, %p156
      %p158 = scmp.ne.s32.totalorder %s150, %s152
      %p159 = scmp.eq.s32.totalorder %s23, 1
      %p160 = por %p158, %p159
      %p161 = scmp.ne.s32.totalorder %s152, %s153
      %p162 = scmp.eq.s32.totalorder %s23, 0
      %p163 = por %p161, %p162
      %p164 = scmp.ne.s32.totalorder %s152, %s153
      %p165 = scmp.eq.s32.totalorder %s24, 1
      %p166 = por %p164, %p165
      %p168 = scmp.ne.s32.totalorder %s153, %s167
      %p169 = scmp.eq.s32.totalorder %s24, 0
      %p170 = por %p168, %p169
      %s171 = ssub.s32 %s25, %s37
      %s172 = ssub.s32 %s26, %s33
      %s173 = sor.u32 %s171, %s172
      %p174 = scmp.eq.s32.totalorder %s173, 0
      %s176 = sadd.s32 %s175, 1
      %s177 = scalar_select %p174, %s175, %s176
      %p180 = pneg %p174
      %p181 = scmp.eq.s32.totalorder %s18, 1
      %p182 = por %p180, %p181
      %p183 = scmp.ne.s32.totalorder %s175, %s178
      %p184 = scmp.eq.s32.totalorder %s18, 0
      %p185 = por %p183, %p184
      %p186 = scmp.ne.s32.totalorder %s175, %s178
      %p187 = scmp.eq.s32.totalorder %s23, 1
      %p188 = por %p186, %p187
      %p189 = scmp.ne.s32.totalorder %s178, %s179
      %p190 = scmp.eq.s32.totalorder %s23, 0
      %p191 = por %p189, %p190
      %p192 = scmp.ne.s32.totalorder %s178, %s179
      %p193 = scmp.eq.s32.totalorder %s24, 1
      %p194 = por %p192, %p193
      %p196 = scmp.ne.s32.totalorder %s179, %s195
      %p197 = scmp.eq.s32.totalorder %s24, 0
      %p198 = por %p196, %p197
      %p199 = scmp.le.s32.totalorder 1, %s18
      %p200 = scmp.lt.s32.totalorder %s18, 3
      %p201 = pnand %p199, %p200
      %p202 = pneg %p201
      // Predicated region
      $region9: #{tpu_custom_call.1} parent=5 // pred_check
        _
      $region10: #{tpu_custom_call.1} parent=5 // pred_check_branch
        %204 = sbr.rel (%p201) target = $region12
      $region11: #{tpu_custom_call.1} parent=5 // pred_region
        %s205 = ssub.s32 %s18, 1
        // Predicated region
        $region13: #{tpu_custom_call.1} parent=11 // pred_check
          %p206 = pneg %p79
        $region14: #{tpu_custom_call.1} parent=11 // pred_check_branch
          %208 = sbr.rel (%p206) target = $region16
        $region15: #{tpu_custom_call.1} parent=11 // pred_region
          _
        $region16: #{tpu_custom_call.1} parent=11 // pred_fallthru
          _
        // Predicated region
        $region17: #{tpu_custom_call.1} parent=11 // pred_check
          %p209 = pneg %p100
        $region18: #{tpu_custom_call.1} parent=11 // pred_check_branch
          %211 = sbr.rel (%p209) target = $region20
        $region19: #{tpu_custom_call.1} parent=11 // pred_region
          _
        $region20: #{tpu_custom_call.1} parent=11 // pred_fallthru
          _
        // Predicated region
        $region21: #{tpu_custom_call.1} parent=11 // pred_check
          %p212 = pneg %p121
        $region22: #{tpu_custom_call.1} parent=11 // pred_check_branch
          %214 = sbr.rel (%p212) target = $region24
        $region23: #{tpu_custom_call.1} parent=11 // pred_region
          _
        $region24: #{tpu_custom_call.1} parent=11 // pred_fallthru
          _
        // Predicated region
        $region25: #{tpu_custom_call.1} parent=11 // pred_check
          %p215 = pneg %p142
        $region26: #{tpu_custom_call.1} parent=11 // pred_check_branch
          %217 = sbr.rel (%p215) target = $region28
        $region27: #{tpu_custom_call.1} parent=11 // pred_region
          _
        $region28: #{tpu_custom_call.1} parent=11 // pred_fallthru
          _
        // Predicated region
        $region29: #{tpu_custom_call.1} parent=11 // pred_check
          %p218 = pneg %p163
        $region30: #{tpu_custom_call.1} parent=11 // pred_check_branch
          %220 = sbr.rel (%p218) target = $region32
        $region31: #{tpu_custom_call.1} parent=11 // pred_region
          _
        $region32: #{tpu_custom_call.1} parent=11 // pred_fallthru
          _
      $region12: #{tpu_custom_call.1} parent=5 // pred_fallthru
        _
      %p221 = scmp.lt.s32.totalorder %s18, 2
      // Predicated region
      $region33: #{tpu_custom_call.1} parent=5 // pred_check
        %p222 = pneg %p221
      $region34: #{tpu_custom_call.1} parent=5 // pred_check_branch
        %224 = sbr.rel (%p222) target = $region36
      $region35: #{tpu_custom_call.1} parent=5 // pred_region
        // Predicated region
        $region37: #{tpu_custom_call.1} parent=35 // pred_check
          %p225 = pneg %p52
        $region38: #{tpu_custom_call.1} parent=35 // pred_check_branch
          %227 = sbr.rel (%p225) target = $region40
        $region39: #{tpu_custom_call.1} parent=35 // pred_region
          %s228 = sand.u32 %s42, 1
          %s229 = scalar_lea.sflag [#allocation3], %s228
          %s230 = sand.u32 %s42, 1
          %s231 = smul.addr %s230, 16
          %s232 = scalar_lea.vmem [#allocation2], %s231
          %s234 = ssub.s32 256, 256
          %235 = vsyncadd %s229, %s234
          %s236 = smul.addr %s25, 2
          %s237 = sadd.s32 %s26, %s236
          %s238 = smul.addr %s237, 128
          %s239 = scalar_lea.hbm %s0, %s238
          %s240 = sshll.u32 %s232, 4
          %s241 = int_to_ptr.vmem [resolvable:$true] %s240
          %246 = dma.hbm_to_vmem [thread:$0]  %s239, 256, %s241, %s229, 128, 128, 8
        $region40: #{tpu_custom_call.1} parent=35 // pred_fallthru
          _
      $region36: #{tpu_custom_call.1} parent=5 // pred_fallthru
        _
      %p247 = scmp.le.s32.totalorder 1, %s18
      %p248 = scmp.lt.s32.totalorder %s18, 3
      %p249 = pnand %p247, %p248
      %p250 = pneg %p249
      // Predicated region
      $region41: #{tpu_custom_call.1} parent=5 // pred_check
        _
      $region42: #{tpu_custom_call.1} parent=5 // pred_check_branch
        %252 = sbr.rel (%p249) target = $region44
      $region43: #{tpu_custom_call.1} parent=5 // pred_region
        %s253 = ssub.s32 %s18, 1
        %s254 = sand.u32 %s45, 1
        %s255 = scalar_lea.sflag [#allocation3], %s254
        %s256 = sand.u32 %s45, 1
        %s257 = smul.addr %s256, 16
        %s258 = scalar_lea.vmem [#allocation2], %s257
        // Predicated region
        $region45: #{tpu_custom_call.1} parent=43 // pred_check
          %p259 = pneg %p58
        $region46: #{tpu_custom_call.1} parent=43 // pred_check_branch
          %261 = sbr.rel (%p259) target = $region48
        $region47: #{tpu_custom_call.1} parent=43 // pred_region
          %262 = dma.done %s255, 256
        $region48: #{tpu_custom_call.1} parent=43 // pred_fallthru
          _
        %s263 = sand.u32 %s45, 1
        %s264 = scalar_lea.sflag [#allocation3], %s263
        %s265 = sand.u32 %s45, 1
        %s266 = smul.addr %s265, 16
        %s267 = scalar_lea.vmem [#allocation2], %s266
        %p268 = pneg %p58
        %p269 = pneg %p55
        %p270 = pneg %p79
        %p271 = pneg %p76
        %p272 = pneg %p100
        %p273 = pneg %p97
        %p274 = pneg %p121
        %p275 = pneg %p118
        %p276 = pneg %p142
        %p277 = pneg %p139
        %p278 = pneg %p163
        %p279 = pneg %p160
        %p280 = pneg %p191
        %p281 = pneg %p188
        %s282 = sand.u32 %s178, 1
        %s283 = scalar_lea.sflag [#allocation4], %s282
        %s284 = sand.u32 %s178, 1
        %s285 = smul.addr %s284, 8
        %s286 = scalar_lea.vmem [#allocation5], %s285
        %v288 = vld [vmem:[%s258] sm:$0xff]
        %v289 = vld [vmem:[%s258 + $0x8] sm:$0xff]
        %v290 = vld [vmem:[%s1] sm:$0xf]
        %v291 = vld [vmem:[%s2] sm:$0xff]
        %v292 = vld [vmem:[%s2 + $0x8] sm:$0xff]
        %vm293 = vcmask 130048
        %v295 = vsel %vm293, %v290, 0
        %297 = vmatprep.subr.mxu0 0.0
        %298 = vmatpush1.msra.mxu0 0.0
        %299 = vmatprep.subr.mxu0 0.0
        %300 = vmatpush1.msra.mxu0 0.0
        %301 = vmatprep.subr.mxu0 0.0
        %302 = vmatpush1.msra.mxu0 0.0
        %303 = vmatprep.subr.mxu0 0.0
        %304 = vmatpush1.msra.mxu0 0.0
        %305 = vmatprep.subr.mxu0 0.0
        %306 = vmatpush1.msra.mxu0 0.0
        %307 = vmatprep.subr.mxu0 0.0
        %308 = vmatpush1.msra.mxu0 0.0
        %309 = vmatprep.subr.mxu0 0.0
        %310 = vmatpush1.msra.mxu0 0.0
        %311 = vmatprep.subr.mxu0 0.0
        %312 = vmatpush1.msra.mxu0 0.0
        %313 = vmatprep.subr.mxu0 0.0
        %314 = vmatpush1.msra.mxu0 0.0
        %315 = vmatprep.subr.mxu0 0.0
        %316 = vmatpush1.msra.mxu0 0.0
        %317 = vmatprep.subr.mxu0 0.0
        %318 = vmatpush1.msra.mxu0 0.0
        %319 = vmatprep.subr.mxu0 0.0
        %320 = vmatpush1.msra.mxu0 0.0
        %321 = vmatprep.subr.mxu0 0.0
        %322 = vmatpush1.msra.mxu0 0.0
        %323 = vmatprep.subr.mxu0 0.0
        %324 = vmatpush1.msra.mxu0 0.0
        %325 = vmatprep.subr.mxu0 0.0
        %v326 = vand.u32 %v289, 4294901760
        %327 = vmatpush1.msra.mxu0 %v326
        %328 = vmatprep.subr.mxu0 0.0
        %v329 = vand.u32 %v288, 4294901760
        %330 = vmatpush1.msra.mxu0 %v329
        %331 = vmatprep.subr.mxu0 0.0
        %332 = vmatpush2.msra.mxu0 0.0
        %333 = vmatprep.subr.mxu0 0.0
        %334 = vmatpush2.msra.mxu0 0.0
        %335 = vmatprep.subr.mxu0 0.0
        %336 = vmatpush2.msra.mxu0 0.0
        %337 = vmatprep.subr.mxu0 0.0
        %338 = vmatpush2.msra.mxu0 0.0
        %339 = vmatprep.subr.mxu0 0.0
        %340 = vmatpush2.msra.mxu0 0.0
        %341 = vmatprep.subr.mxu0 0.0
        %342 = vmatpush2.msra.mxu0 0.0
        %343 = vmatprep.subr.mxu0 0.0
        %344 = vmatpush2.msra.mxu0 0.0
        %345 = vmatprep.subr.mxu0 0.0
        %346 = vmatpush2.msra.mxu0 0.0
        %347 = vmatprep.subr.mxu0 0.0
        %348 = vmatpush2.msra.mxu0 0.0
        %349 = vmatprep.subr.mxu0 0.0
        %350 = vmatpush2.msra.mxu0 0.0
        %351 = vmatprep.subr.mxu0 0.0
        %352 = vmatpush2.msra.mxu0 0.0
        %353 = vmatprep.subr.mxu0 0.0
        %354 = vmatpush2.msra.mxu0 0.0
        %355 = vmatprep.subr.mxu0 0.0
        %356 = vmatpush2.msra.mxu0 0.0
        %357 = vmatprep.subr.mxu0 0.0
        %358 = vmatpush2.msra.mxu0 0.0
        %359 = vmatprep.subr.mxu0 0.0
        %360 = vmatpush2.msra.mxu0 0.0
        %361 = vmatprep.subr.mxu0 0.0
        %362 = vmatpush2.msra.mxu0 0.0
        %363 = vmatprep.mubr.f32.mxu0 0.0
        %v364 = vand.u32 %v295, 4294901760
        %v365 = vsub.f32 %v295, %v364
        %v366 = vand.u32 %v365, 4294901760
        %v367 = vsub.f32 %v365, %v366
        %v368 = vand.u32 %v367, 4294901760
        %369 = vmatmul.mubr.f32.gmra.mxu0 %v368
        %v370 = vpop.f32.mrf.mxu0
        %v371 = vadd.f32 0.0, %v370
        %v372 = vpop.f32.mrf.mxu0
        %373 = vdwg.mxu0
        %374 = vmatprep.subr.mxu0 0.0
        %375 = vmatpush1.msra.mxu0 0.0
        %376 = vmatprep.subr.mxu0 0.0
        %377 = vmatpush1.msra.mxu0 0.0
        %378 = vmatprep.subr.mxu0 0.0
        %379 = vmatpush1.msra.mxu0 0.0
        %380 = vmatprep.subr.mxu0 0.0
        %381 = vmatpush1.msra.mxu0 0.0
        %382 = vmatprep.subr.mxu0 0.0
        %383 = vmatpush1.msra.mxu0 0.0
        %384 = vmatprep.subr.mxu0 0.0
        %385 = vmatpush1.msra.mxu0 0.0
        %386 = vmatprep.subr.mxu0 0.0
        %387 = vmatpush1.msra.mxu0 0.0
        %388 = vmatprep.subr.mxu0 0.0
        %389 = vmatpush1.msra.mxu0 0.0
        %390 = vmatprep.subr.mxu0 0.0
        %391 = vmatpush1.msra.mxu0 0.0
        %392 = vmatprep.subr.mxu0 0.0
        %393 = vmatpush1.msra.mxu0 0.0
        %394 = vmatprep.subr.mxu0 0.0
        %395 = vmatpush1.msra.mxu0 0.0
        %396 = vmatprep.subr.mxu0 0.0
        %397 = vmatpush1.msra.mxu0 0.0
        %398 = vmatprep.subr.mxu0 0.0
        %399 = vmatpush1.msra.mxu0 0.0
        %400 = vmatprep.subr.mxu0 0.0
        %401 = vmatpush1.msra.mxu0 0.0
        %402 = vmatprep.subr.mxu0 0.0
        %v403 = vand.u32 %v289, 4294901760
        %v404 = vsub.f32 %v289, %v403
        %v405 = vand.u32 %v404, 4294901760
        %v406 = vsub.f32 %v404, %v405
        %v407 = vand.u32 %v406, 4294901760
        %408 = vmatpush1.msra.mxu0 %v407
        %409 = vmatprep.subr.mxu0 0.0
        %v410 = vand.u32 %v288, 4294901760
        %v411 = vsub.f32 %v288, %v410
        %v412 = vand.u32 %v411, 4294901760
        %v413 = vsub.f32 %v411, %v412
        %v414 = vand.u32 %v413, 4294901760
        %415 = vmatpush1.msra.mxu0 %v414
        %416 = vmatprep.subr.mxu0 0.0
        %417 = vmatpush2.msra.mxu0 0.0
        %418 = vmatprep.subr.mxu0 0.0
        %419 = vmatpush2.msra.mxu0 0.0
        %420 = vmatprep.subr.mxu0 0.0
        %421 = vmatpush2.msra.mxu0 0.0
        %422 = vmatprep.subr.mxu0 0.0
        %423 = vmatpush2.msra.mxu0 0.0
        %424 = vmatprep.subr.mxu0 0.0
        %425 = vmatpush2.msra.mxu0 0.0
        %426 = vmatprep.subr.mxu0 0.0
        %427 = vmatpush2.msra.mxu0 0.0
        %428 = vmatprep.subr.mxu0 0.0
        %429 = vmatpush2.msra.mxu0 0.0
        %430 = vmatprep.subr.mxu0 0.0
        %431 = vmatpush2.msra.mxu0 0.0
        %432 = vmatprep.subr.mxu0 0.0
        %433 = vmatpush2.msra.mxu0 0.0
        %434 = vmatprep.subr.mxu0 0.0
        %435 = vmatpush2.msra.mxu0 0.0
        %436 = vmatprep.subr.mxu0 0.0
        %437 = vmatpush2.msra.mxu0 0.0
        %438 = vmatprep.subr.mxu0 0.0
        %439 = vmatpush2.msra.mxu0 0.0
        %440 = vmatprep.subr.mxu0 0.0
        %441 = vmatpush2.msra.mxu0 0.0
        %442 = vmatprep.subr.mxu0 0.0
        %443 = vmatpush2.msra.mxu0 0.0
        %444 = vmatprep.subr.mxu0 0.0
        %445 = vmatpush2.msra.mxu0 0.0
        %446 = vmatprep.subr.mxu0 0.0
        %447 = vmatpush2.msra.mxu0 0.0
        %448 = vmatprep.mubr.f32.mxu0 0.0
        %v449 = vand.u32 %v295, 4294901760
        %450 = vmatmul.mubr.f32.gmra.mxu0 %v449
        %v451 = vpop.f32.mrf.mxu0
        %v452 = vadd.f32 %v371, %v451
        %v453 = vpop.f32.mrf.mxu0
        %454 = vdwg.mxu0
        %455 = vmatprep.subr.mxu0 0.0
        %456 = vmatpush1.msra.mxu0 0.0
        %457 = vmatprep.subr.mxu0 0.0
        %458 = vmatpush1.msra.mxu0 0.0
        %459 = vmatprep.subr.mxu0 0.0
        %460 = vmatpush1.msra.mxu0 0.0
        %461 = vmatprep.subr.mxu0 0.0
        %462 = vmatpush1.msra.mxu0 0.0
        %463 = vmatprep.subr.mxu0 0.0
        %464 = vmatpush1.msra.mxu0 0.0
        %465 = vmatprep.subr.mxu0 0.0
        %466 = vmatpush1.msra.mxu0 0.0
        %467 = vmatprep.subr.mxu0 0.0
        %468 = vmatpush1.msra.mxu0 0.0
        %469 = vmatprep.subr.mxu0 0.0
        %470 = vmatpush1.msra.mxu0 0.0
        %471 = vmatprep.subr.mxu0 0.0
        %472 = vmatpush1.msra.mxu0 0.0
        %473 = vmatprep.subr.mxu0 0.0
        %474 = vmatpush1.msra.mxu0 0.0
        %475 = vmatprep.subr.mxu0 0.0
        %476 = vmatpush1.msra.mxu0 0.0
        %477 = vmatprep.subr.mxu0 0.0
        %478 = vmatpush1.msra.mxu0 0.0
        %479 = vmatprep.subr.mxu0 0.0
        %480 = vmatpush1.msra.mxu0 0.0
        %481 = vmatprep.subr.mxu0 0.0
        %482 = vmatpush1.msra.mxu0 0.0
        %483 = vmatprep.subr.mxu0 0.0
        %v484 = vand.u32 %v289, 4294901760
        %v485 = vsub.f32 %v289, %v484
        %486 = vmatpush1.msra.mxu0 %v485
        %487 = vmatprep.subr.mxu0 0.0
        %v488 = vand.u32 %v288, 4294901760
        %v489 = vsub.f32 %v288, %v488
        %490 = vmatpush1.msra.mxu0 %v489
        %491 = vmatprep.subr.mxu0 0.0
        %492 = vmatpush2.msra.mxu0 0.0
        %493 = vmatprep.subr.mxu0 0.0
        %494 = vmatpush2.msra.mxu0 0.0
        %495 = vmatprep.subr.mxu0 0.0
        %496 = vmatpush2.msra.mxu0 0.0
        %497 = vmatprep.subr.mxu0 0.0
        %498 = vmatpush2.msra.mxu0 0.0
        %499 = vmatprep.subr.mxu0 0.0
        %500 = vmatpush2.msra.mxu0 0.0
        %501 = vmatprep.subr.mxu0 0.0
        %502 = vmatpush2.msra.mxu0 0.0
        %503 = vmatprep.subr.mxu0 0.0
        %504 = vmatpush2.msra.mxu0 0.0
        %505 = vmatprep.subr.mxu0 0.0
        %506 = vmatpush2.msra.mxu0 0.0
        %507 = vmatprep.subr.mxu0 0.0
        %508 = vmatpush2.msra.mxu0 0.0
        %509 = vmatprep.subr.mxu0 0.0
        %510 = vmatpush2.msra.mxu0 0.0
        %511 = vmatprep.subr.mxu0 0.0
        %512 = vmatpush2.msra.mxu0 0.0
        %513 = vmatprep.subr.mxu0 0.0
        %514 = vmatpush2.msra.mxu0 0.0
        %515 = vmatprep.subr.mxu0 0.0
        %516 = vmatpush2.msra.mxu0 0.0
        %517 = vmatprep.subr.mxu0 0.0
        %518 = vmatpush2.msra.mxu0 0.0
        %519 = vmatprep.subr.mxu0 0.0
        %520 = vmatpush2.msra.mxu0 0.0
        %521 = vmatprep.subr.mxu0 0.0
        %522 = vmatpush2.msra.mxu0 0.0
        %523 = vmatprep.mubr.f32.mxu0 0.0
        %v524 = vand.u32 %v295, 4294901760
        %v525 = vsub.f32 %v295, %v524
        %526 = vmatmul.mubr.f32.gmra.mxu0 %v525
        %v527 = vpop.f32.mrf.mxu0
        %v528 = vadd.f32 %v452, %v527
        %v529 = vpop.f32.mrf.mxu0
        %530 = vdwg.mxu0
        %531 = vmatprep.subr.mxu0 0.0
        %532 = vmatpush1.msra.mxu0 0.0
        %533 = vmatprep.subr.mxu0 0.0
        %534 = vmatpush1.msra.mxu0 0.0
        %535 = vmatprep.subr.mxu0 0.0
        %536 = vmatpush1.msra.mxu0 0.0
        %537 = vmatprep.subr.mxu0 0.0
        %538 = vmatpush1.msra.mxu0 0.0
        %539 = vmatprep.subr.mxu0 0.0
        %540 = vmatpush1.msra.mxu0 0.0
        %541 = vmatprep.subr.mxu0 0.0
        %542 = vmatpush1.msra.mxu0 0.0
        %543 = vmatprep.subr.mxu0 0.0
        %544 = vmatpush1.msra.mxu0 0.0
        %545 = vmatprep.subr.mxu0 0.0
        %546 = vmatpush1.msra.mxu0 0.0
        %547 = vmatprep.subr.mxu0 0.0
        %548 = vmatpush1.msra.mxu0 0.0
        %549 = vmatprep.subr.mxu0 0.0
        %550 = vmatpush1.msra.mxu0 0.0
        %551 = vmatprep.subr.mxu0 0.0
        %552 = vmatpush1.msra.mxu0 0.0
        %553 = vmatprep.subr.mxu0 0.0
        %554 = vmatpush1.msra.mxu0 0.0
        %555 = vmatprep.subr.mxu0 0.0
        %556 = vmatpush1.msra.mxu0 0.0
        %557 = vmatprep.subr.mxu0 0.0
        %558 = vmatpush1.msra.mxu0 0.0
        %559 = vmatprep.subr.mxu0 0.0
        %v560 = vand.u32 %v289, 4294901760
        %561 = vmatpush1.msra.mxu0 %v560
        %562 = vmatprep.subr.mxu0 0.0
        %v563 = vand.u32 %v288, 4294901760
        %564 = vmatpush1.msra.mxu0 %v563
        %565 = vmatprep.subr.mxu0 0.0
        %566 = vmatpush2.msra.mxu0 0.0
        %567 = vmatprep.subr.mxu0 0.0
        %568 = vmatpush2.msra.mxu0 0.0
        %569 = vmatprep.subr.mxu0 0.0
        %570 = vmatpush2.msra.mxu0 0.0
        %571 = vmatprep.subr.mxu0 0.0
        %572 = vmatpush2.msra.mxu0 0.0
        %573 = vmatprep.subr.mxu0 0.0
        %574 = vmatpush2.msra.mxu0 0.0
        %575 = vmatprep.subr.mxu0 0.0
        %576 = vmatpush2.msra.mxu0 0.0
        %577 = vmatprep.subr.mxu0 0.0
        %578 = vmatpush2.msra.mxu0 0.0
        %579 = vmatprep.subr.mxu0 0.0
        %580 = vmatpush2.msra.mxu0 0.0
        %581 = vmatprep.subr.mxu0 0.0
        %582 = vmatpush2.msra.mxu0 0.0
        %583 = vmatprep.subr.mxu0 0.0
        %584 = vmatpush2.msra.mxu0 0.0
        %585 = vmatprep.subr.mxu0 0.0
        %586 = vmatpush2.msra.mxu0 0.0
        %587 = vmatprep.subr.mxu0 0.0
        %588 = vmatpush2.msra.mxu0 0.0
        %589 = vmatprep.subr.mxu0 0.0
        %590 = vmatpush2.msra.mxu0 0.0
        %591 = vmatprep.subr.mxu0 0.0
        %592 = vmatpush2.msra.mxu0 0.0
        %593 = vmatprep.subr.mxu0 0.0
        %594 = vmatpush2.msra.mxu0 0.0
        %595 = vmatprep.subr.mxu0 0.0
        %596 = vmatpush2.msra.mxu0 0.0
        %597 = vmatprep.mubr.f32.mxu0 0.0
        %v598 = vand.u32 %v295, 4294901760
        %v599 = vsub.f32 %v295, %v598
        %v600 = vand.u32 %v599, 4294901760
        %601 = vmatmul.mubr.f32.gmra.mxu0 %v600
        %v602 = vpop.f32.mrf.mxu0
        %v603 = vadd.f32 %v528, %v602
        %v604 = vpop.f32.mrf.mxu0
        %605 = vdwg.mxu0
        %606 = vmatprep.subr.mxu0 0.0
        %607 = vmatpush1.msra.mxu0 0.0
        %608 = vmatprep.subr.mxu0 0.0
        %609 = vmatpush1.msra.mxu0 0.0
        %610 = vmatprep.subr.mxu0 0.0
        %611 = vmatpush1.msra.mxu0 0.0
        %612 = vmatprep.subr.mxu0 0.0
        %613 = vmatpush1.msra.mxu0 0.0
        %614 = vmatprep.subr.mxu0 0.0
        %615 = vmatpush1.msra.mxu0 0.0
        %616 = vmatprep.subr.mxu0 0.0
        %617 = vmatpush1.msra.mxu0 0.0
        %618 = vmatprep.subr.mxu0 0.0
        %619 = vmatpush1.msra.mxu0 0.0
        %620 = vmatprep.subr.mxu0 0.0
        %621 = vmatpush1.msra.mxu0 0.0
        %622 = vmatprep.subr.mxu0 0.0
        %623 = vmatpush1.msra.mxu0 0.0
        %624 = vmatprep.subr.mxu0 0.0
        %625 = vmatpush1.msra.mxu0 0.0
        %626 = vmatprep.subr.mxu0 0.0
        %627 = vmatpush1.msra.mxu0 0.0
        %628 = vmatprep.subr.mxu0 0.0
        %629 = vmatpush1.msra.mxu0 0.0
        %630 = vmatprep.subr.mxu0 0.0
        %631 = vmatpush1.msra.mxu0 0.0
        %632 = vmatprep.subr.mxu0 0.0
        %633 = vmatpush1.msra.mxu0 0.0
        %634 = vmatprep.subr.mxu0 0.0
        %v635 = vand.u32 %v289, 4294901760
        %v636 = vsub.f32 %v289, %v635
        %v637 = vand.u32 %v636, 4294901760
        %638 = vmatpush1.msra.mxu0 %v637
        %639 = vmatprep.subr.mxu0 0.0
        %v640 = vand.u32 %v288, 4294901760
        %v641 = vsub.f32 %v288, %v640
        %v642 = vand.u32 %v641, 4294901760
        %643 = vmatpush1.msra.mxu0 %v642
        %644 = vmatprep.subr.mxu0 0.0
        %645 = vmatpush2.msra.mxu0 0.0
        %646 = vmatprep.subr.mxu0 0.0
        %647 = vmatpush2.msra.mxu0 0.0
        %648 = vmatprep.subr.mxu0 0.0
        %649 = vmatpush2.msra.mxu0 0.0
        %650 = vmatprep.subr.mxu0 0.0
        %651 = vmatpush2.msra.mxu0 0.0
        %652 = vmatprep.subr.mxu0 0.0
        %653 = vmatpush2.msra.mxu0 0.0
        %654 = vmatprep.subr.mxu0 0.0
        %655 = vmatpush2.msra.mxu0 0.0
        %656 = vmatprep.subr.mxu0 0.0
        %657 = vmatpush2.msra.mxu0 0.0
        %658 = vmatprep.subr.mxu0 0.0
        %659 = vmatpush2.msra.mxu0 0.0
        %660 = vmatprep.subr.mxu0 0.0
        %661 = vmatpush2.msra.mxu0 0.0
        %662 = vmatprep.subr.mxu0 0.0
        %663 = vmatpush2.msra.mxu0 0.0
        %664 = vmatprep.subr.mxu0 0.0
        %665 = vmatpush2.msra.mxu0 0.0
        %666 = vmatprep.subr.mxu0 0.0
        %667 = vmatpush2.msra.mxu0 0.0
        %668 = vmatprep.subr.mxu0 0.0
        %669 = vmatpush2.msra.mxu0 0.0
        %670 = vmatprep.subr.mxu0 0.0
        %671 = vmatpush2.msra.mxu0 0.0
        %672 = vmatprep.subr.mxu0 0.0
        %673 = vmatpush2.msra.mxu0 0.0
        %674 = vmatprep.subr.mxu0 0.0
        %675 = vmatpush2.msra.mxu0 0.0
        %676 = vmatprep.mubr.f32.mxu0 0.0
        %v677 = vand.u32 %v295, 4294901760
        %678 = vmatmul.mubr.f32.gmra.mxu0 %v677
        %v679 = vpop.f32.mrf.mxu0
        %v680 = vadd.f32 %v603, %v679
        %v681 = vpop.f32.mrf.mxu0
        %682 = vdwg.mxu0
        %683 = vmatprep.subr.mxu0 0.0
        %684 = vmatpush1.msra.mxu0 0.0
        %685 = vmatprep.subr.mxu0 0.0
        %686 = vmatpush1.msra.mxu0 0.0
        %687 = vmatprep.subr.mxu0 0.0
        %688 = vmatpush1.msra.mxu0 0.0
        %689 = vmatprep.subr.mxu0 0.0
        %690 = vmatpush1.msra.mxu0 0.0
        %691 = vmatprep.subr.mxu0 0.0
        %692 = vmatpush1.msra.mxu0 0.0
        %693 = vmatprep.subr.mxu0 0.0
        %694 = vmatpush1.msra.mxu0 0.0
        %695 = vmatprep.subr.mxu0 0.0
        %696 = vmatpush1.msra.mxu0 0.0
        %697 = vmatprep.subr.mxu0 0.0
        %698 = vmatpush1.msra.mxu0 0.0
        %699 = vmatprep.subr.mxu0 0.0
        %700 = vmatpush1.msra.mxu0 0.0
        %701 = vmatprep.subr.mxu0 0.0
        %702 = vmatpush1.msra.mxu0 0.0
        %703 = vmatprep.subr.mxu0 0.0
        %704 = vmatpush1.msra.mxu0 0.0
        %705 = vmatprep.subr.mxu0 0.0
        %706 = vmatpush1.msra.mxu0 0.0
        %707 = vmatprep.subr.mxu0 0.0
        %708 = vmatpush1.msra.mxu0 0.0
        %709 = vmatprep.subr.mxu0 0.0
        %710 = vmatpush1.msra.mxu0 0.0
        %711 = vmatprep.subr.mxu0 0.0
        %v712 = vand.u32 %v289, 4294901760
        %713 = vmatpush1.msra.mxu0 %v712
        %714 = vmatprep.subr.mxu0 0.0
        %v715 = vand.u32 %v288, 4294901760
        %716 = vmatpush1.msra.mxu0 %v715
        %717 = vmatprep.subr.mxu0 0.0
        %718 = vmatpush2.msra.mxu0 0.0
        %719 = vmatprep.subr.mxu0 0.0
        %720 = vmatpush2.msra.mxu0 0.0
        %721 = vmatprep.subr.mxu0 0.0
        %722 = vmatpush2.msra.mxu0 0.0
        %723 = vmatprep.subr.mxu0 0.0
        %724 = vmatpush2.msra.mxu0 0.0
        %725 = vmatprep.subr.mxu0 0.0
        %726 = vmatpush2.msra.mxu0 0.0
        %727 = vmatprep.subr.mxu0 0.0
        %728 = vmatpush2.msra.mxu0 0.0
        %729 = vmatprep.subr.mxu0 0.0
        %730 = vmatpush2.msra.mxu0 0.0
        %731 = vmatprep.subr.mxu0 0.0
        %732 = vmatpush2.msra.mxu0 0.0
        %733 = vmatprep.subr.mxu0 0.0
        %734 = vmatpush2.msra.mxu0 0.0
        %735 = vmatprep.subr.mxu0 0.0
        %736 = vmatpush2.msra.mxu0 0.0
        %737 = vmatprep.subr.mxu0 0.0
        %738 = vmatpush2.msra.mxu0 0.0
        %739 = vmatprep.subr.mxu0 0.0
        %740 = vmatpush2.msra.mxu0 0.0
        %741 = vmatprep.subr.mxu0 0.0
        %742 = vmatpush2.msra.mxu0 0.0
        %743 = vmatprep.subr.mxu0 0.0
        %744 = vmatpush2.msra.mxu0 0.0
        %745 = vmatprep.subr.mxu0 0.0
        %746 = vmatpush2.msra.mxu0 0.0
        %747 = vmatprep.subr.mxu0 0.0
        %748 = vmatpush2.msra.mxu0 0.0
        %749 = vmatprep.mubr.f32.mxu0 0.0
        %v750 = vand.u32 %v295, 4294901760
        %751 = vmatmul.mubr.f32.gmra.mxu0 %v750
        %v752 = vpop.f32.mrf.mxu0
        %v753 = vadd.f32 %v680, %v752
        %v754 = vpop.f32.mrf.mxu0
        %755 = vdwg.mxu0
        %vm756 = vcmask 31744
        %v758 = vsel %vm756, %v291, 0
        %v761 = vsel %vm756, %v292, 0
        %vm763 = vcmask 1043456
        %v765 = vsel %vm763, %v753, 0
        %767 = vmatprep.subr.mxu0 0.0
        %768 = vmatpush1.msra.mxu0 0.0
        %769 = vmatprep.subr.mxu0 0.0
        %770 = vmatpush1.msra.mxu0 0.0
        %771 = vmatprep.subr.mxu0 0.0
        %772 = vmatpush1.msra.mxu0 0.0
        %773 = vmatprep.subr.mxu0 0.0
        %774 = vmatpush1.msra.mxu0 0.0
        %775 = vmatprep.subr.mxu0 0.0
        %776 = vmatpush1.msra.mxu0 0.0
        %777 = vmatprep.subr.mxu0 0.0
        %778 = vmatpush1.msra.mxu0 0.0
        %779 = vmatprep.subr.mxu0 0.0
        %780 = vmatpush1.msra.mxu0 0.0
        %781 = vmatprep.subr.mxu0 0.0
        %782 = vmatpush1.msra.mxu0 0.0
        %783 = vmatprep.subr.mxu0 0.0
        %784 = vmatpush1.msra.mxu0 0.0
        %785 = vmatprep.subr.mxu0 0.0
        %786 = vmatpush1.msra.mxu0 0.0
        %787 = vmatprep.subr.mxu0 0.0
        %788 = vmatpush1.msra.mxu0 0.0
        %789 = vmatprep.subr.mxu0 0.0
        %790 = vmatpush1.msra.mxu0 0.0
        %791 = vmatprep.subr.mxu0 0.0
        %792 = vmatpush1.msra.mxu0 0.0
        %793 = vmatprep.subr.mxu0 0.0
        %794 = vmatpush1.msra.mxu0 0.0
        %795 = vmatprep.subr.mxu0 0.0
        %796 = vmatpush1.msra.mxu0 0.0
        %797 = vmatprep.subr.mxu0 0.0
        %v798 = vand.u32 %v765, 4294901760
        %799 = vmatpush1.msra.mxu0 %v798
        %800 = vmatprep.subr.mxu0 0.0
        %801 = vmatpush2.msra.mxu0 0.0
        %802 = vmatprep.subr.mxu0 0.0
        %803 = vmatpush2.msra.mxu0 0.0
        %804 = vmatprep.subr.mxu0 0.0
        %805 = vmatpush2.msra.mxu0 0.0
        %806 = vmatprep.subr.mxu0 0.0
        %807 = vmatpush2.msra.mxu0 0.0
        %808 = vmatprep.subr.mxu0 0.0
        %809 = vmatpush2.msra.mxu0 0.0
        %810 = vmatprep.subr.mxu0 0.0
        %811 = vmatpush2.msra.mxu0 0.0
        %812 = vmatprep.subr.mxu0 0.0
        %813 = vmatpush2.msra.mxu0 0.0
        %814 = vmatprep.subr.mxu0 0.0
        %815 = vmatpush2.msra.mxu0 0.0
        %816 = vmatprep.subr.mxu0 0.0
        %817 = vmatpush2.msra.mxu0 0.0
        %818 = vmatprep.subr.mxu0 0.0
        %819 = vmatpush2.msra.mxu0 0.0
        %820 = vmatprep.subr.mxu0 0.0
        %821 = vmatpush2.msra.mxu0 0.0
        %822 = vmatprep.subr.mxu0 0.0
        %823 = vmatpush2.msra.mxu0 0.0
        %824 = vmatprep.subr.mxu0 0.0
        %825 = vmatpush2.msra.mxu0 0.0
        %826 = vmatprep.subr.mxu0 0.0
        %827 = vmatpush2.msra.mxu0 0.0
        %828 = vmatprep.subr.mxu0 0.0
        %829 = vmatpush2.msra.mxu0 0.0
        %830 = vmatprep.subr.mxu0 0.0
        %831 = vmatpush2.msra.mxu0 0.0
        %832 = vmatprep.mubr.f32.mxu0 0.0
        %v833 = vand.u32 %v758, 4294901760
        %v834 = vsub.f32 %v758, %v833
        %v835 = vand.u32 %v834, 4294901760
        %v836 = vsub.f32 %v834, %v835
        %v837 = vand.u32 %v836, 4294901760
        %838 = vmatmul.mubr.f32.gmra.mxu0 %v837
        %v839 = vpop.f32.mrf.mxu0
        %v840 = vadd.f32 0.0, %v839
        %v841 = vpop.f32.mrf.mxu0
        %842 = vmatprep.mubr.f32.mxu0 0.0
        %v843 = vand.u32 %v761, 4294901760
        %v844 = vsub.f32 %v761, %v843
        %v845 = vand.u32 %v844, 4294901760
        %v846 = vsub.f32 %v844, %v845
        %v847 = vand.u32 %v846, 4294901760
        %848 = vmatmul.mubr.f32.gmra.mxu0 %v847
        %v849 = vpop.f32.mrf.mxu0
        %v850 = vadd.f32 0.0, %v849
        %v851 = vpop.f32.mrf.mxu0
        %852 = vdwg.mxu0
        %853 = vmatprep.subr.mxu0 0.0
        %854 = vmatpush1.msra.mxu0 0.0
        %855 = vmatprep.subr.mxu0 0.0
        %856 = vmatpush1.msra.mxu0 0.0
        %857 = vmatprep.subr.mxu0 0.0
        %858 = vmatpush1.msra.mxu0 0.0
        %859 = vmatprep.subr.mxu0 0.0
        %860 = vmatpush1.msra.mxu0 0.0
        %861 = vmatprep.subr.mxu0 0.0
        %862 = vmatpush1.msra.mxu0 0.0
        %863 = vmatprep.subr.mxu0 0.0
        %864 = vmatpush1.msra.mxu0 0.0
        %865 = vmatprep.subr.mxu0 0.0
        %866 = vmatpush1.msra.mxu0 0.0
        %867 = vmatprep.subr.mxu0 0.0
        %868 = vmatpush1.msra.mxu0 0.0
        %869 = vmatprep.subr.mxu0 0.0
        %870 = vmatpush1.msra.mxu0 0.0
        %871 = vmatprep.subr.mxu0 0.0
        %872 = vmatpush1.msra.mxu0 0.0
        %873 = vmatprep.subr.mxu0 0.0
        %874 = vmatpush1.msra.mxu0 0.0
        %875 = vmatprep.subr.mxu0 0.0
        %876 = vmatpush1.msra.mxu0 0.0
        %877 = vmatprep.subr.mxu0 0.0
        %878 = vmatpush1.msra.mxu0 0.0
        %879 = vmatprep.subr.mxu0 0.0
        %880 = vmatpush1.msra.mxu0 0.0
        %881 = vmatprep.subr.mxu0 0.0
        %882 = vmatpush1.msra.mxu0 0.0
        %883 = vmatprep.subr.mxu0 0.0
        %v884 = vand.u32 %v765, 4294901760
        %v885 = vsub.f32 %v765, %v884
        %v886 = vand.u32 %v885, 4294901760
        %v887 = vsub.f32 %v885, %v886
        %v888 = vand.u32 %v887, 4294901760
        %889 = vmatpush1.msra.mxu0 %v888
        %890 = vmatprep.subr.mxu0 0.0
        %891 = vmatpush2.msra.mxu0 0.0
        %892 = vmatprep.subr.mxu0 0.0
        %893 = vmatpush2.msra.mxu0 0.0
        %894 = vmatprep.subr.mxu0 0.0
        %895 = vmatpush2.msra.mxu0 0.0
        %896 = vmatprep.subr.mxu0 0.0
        %897 = vmatpush2.msra.mxu0 0.0
        %898 = vmatprep.subr.mxu0 0.0
        %899 = vmatpush2.msra.mxu0 0.0
        %900 = vmatprep.subr.mxu0 0.0
        %901 = vmatpush2.msra.mxu0 0.0
        %902 = vmatprep.subr.mxu0 0.0
        %903 = vmatpush2.msra.mxu0 0.0
        %904 = vmatprep.subr.mxu0 0.0
        %905 = vmatpush2.msra.mxu0 0.0
        %906 = vmatprep.subr.mxu0 0.0
        %907 = vmatpush2.msra.mxu0 0.0
        %908 = vmatprep.subr.mxu0 0.0
        %909 = vmatpush2.msra.mxu0 0.0
        %910 = vmatprep.subr.mxu0 0.0
        %911 = vmatpush2.msra.mxu0 0.0
        %912 = vmatprep.subr.mxu0 0.0
        %913 = vmatpush2.msra.mxu0 0.0
        %914 = vmatprep.subr.mxu0 0.0
        %915 = vmatpush2.msra.mxu0 0.0
        %916 = vmatprep.subr.mxu0 0.0
        %917 = vmatpush2.msra.mxu0 0.0
        %918 = vmatprep.subr.mxu0 0.0
        %919 = vmatpush2.msra.mxu0 0.0
        %920 = vmatprep.subr.mxu0 0.0
        %921 = vmatpush2.msra.mxu0 0.0
        %922 = vmatprep.mubr.f32.mxu0 0.0
        %v923 = vand.u32 %v758, 4294901760
        %924 = vmatmul.mubr.f32.gmra.mxu0 %v923
        %v925 = vpop.f32.mrf.mxu0
        %v926 = vadd.f32 %v840, %v925
        %v927 = vpop.f32.mrf.mxu0
        %928 = vmatprep.mubr.f32.mxu0 0.0
        %v929 = vand.u32 %v761, 4294901760
        %930 = vmatmul.mubr.f32.gmra.mxu0 %v929
        %v931 = vpop.f32.mrf.mxu0
        %v932 = vadd.f32 %v850, %v931
        %v933 = vpop.f32.mrf.mxu0
        %934 = vdwg.mxu0
        %935 = vmatprep.subr.mxu0 0.0
        %936 = vmatpush1.msra.mxu0 0.0
        %937 = vmatprep.subr.mxu0 0.0
        %938 = vmatpush1.msra.mxu0 0.0
        %939 = vmatprep.subr.mxu0 0.0
        %940 = vmatpush1.msra.mxu0 0.0
        %941 = vmatprep.subr.mxu0 0.0
        %942 = vmatpush1.msra.mxu0 0.0
        %943 = vmatprep.subr.mxu0 0.0
        %944 = vmatpush1.msra.mxu0 0.0
        %945 = vmatprep.subr.mxu0 0.0
        %946 = vmatpush1.msra.mxu0 0.0
        %947 = vmatprep.subr.mxu0 0.0
        %948 = vmatpush1.msra.mxu0 0.0
        %949 = vmatprep.subr.mxu0 0.0
        %950 = vmatpush1.msra.mxu0 0.0
        %951 = vmatprep.subr.mxu0 0.0
        %952 = vmatpush1.msra.mxu0 0.0
        %953 = vmatprep.subr.mxu0 0.0
        %954 = vmatpush1.msra.mxu0 0.0
        %955 = vmatprep.subr.mxu0 0.0
        %956 = vmatpush1.msra.mxu0 0.0
        %957 = vmatprep.subr.mxu0 0.0
        %958 = vmatpush1.msra.mxu0 0.0
        %959 = vmatprep.subr.mxu0 0.0
        %960 = vmatpush1.msra.mxu0 0.0
        %961 = vmatprep.subr.mxu0 0.0
        %962 = vmatpush1.msra.mxu0 0.0
        %963 = vmatprep.subr.mxu0 0.0
        %964 = vmatpush1.msra.mxu0 0.0
        %965 = vmatprep.subr.mxu0 0.0
        %v966 = vand.u32 %v765, 4294901760
        %v967 = vsub.f32 %v765, %v966
        %968 = vmatpush1.msra.mxu0 %v967
        %969 = vmatprep.subr.mxu0 0.0
        %970 = vmatpush2.msra.mxu0 0.0
        %971 = vmatprep.subr.mxu0 0.0
        %972 = vmatpush2.msra.mxu0 0.0
        %973 = vmatprep.subr.mxu0 0.0
        %974 = vmatpush2.msra.mxu0 0.0
        %975 = vmatprep.subr.mxu0 0.0
        %976 = vmatpush2.msra.mxu0 0.0
        %977 = vmatprep.subr.mxu0 0.0
        %978 = vmatpush2.msra.mxu0 0.0
        %979 = vmatprep.subr.mxu0 0.0
        %980 = vmatpush2.msra.mxu0 0.0
        %981 = vmatprep.subr.mxu0 0.0
        %982 = vmatpush2.msra.mxu0 0.0
        %983 = vmatprep.subr.mxu0 0.0
        %984 = vmatpush2.msra.mxu0 0.0
        %985 = vmatprep.subr.mxu0 0.0
        %986 = vmatpush2.msra.mxu0 0.0
        %987 = vmatprep.subr.mxu0 0.0
        %988 = vmatpush2.msra.mxu0 0.0
        %989 = vmatprep.subr.mxu0 0.0
        %990 = vmatpush2.msra.mxu0 0.0
        %991 = vmatprep.subr.mxu0 0.0
        %992 = vmatpush2.msra.mxu0 0.0
        %993 = vmatprep.subr.mxu0 0.0
        %994 = vmatpush2.msra.mxu0 0.0
        %995 = vmatprep.subr.mxu0 0.0
        %996 = vmatpush2.msra.mxu0 0.0
        %997 = vmatprep.subr.mxu0 0.0
        %998 = vmatpush2.msra.mxu0 0.0
        %999 = vmatprep.subr.mxu0 0.0
        %1000 = vmatpush2.msra.mxu0 0.0
        %1001 = vmatprep.mubr.f32.mxu0 0.0
        %v1002 = vand.u32 %v758, 4294901760
        %v1003 = vsub.f32 %v758, %v1002
        %1004 = vmatmul.mubr.f32.gmra.mxu0 %v1003
        %v1005 = vpop.f32.mrf.mxu0
        %v1006 = vadd.f32 %v926, %v1005
        %v1007 = vpop.f32.mrf.mxu0
        %1008 = vmatprep.mubr.f32.mxu0 0.0
        %v1009 = vand.u32 %v761, 4294901760
        %v1010 = vsub.f32 %v761, %v1009
        %1011 = vmatmul.mubr.f32.gmra.mxu0 %v1010
        %v1012 = vpop.f32.mrf.mxu0
        %v1013 = vadd.f32 %v932, %v1012
        %v1014 = vpop.f32.mrf.mxu0
        %1015 = vdwg.mxu0
        %1016 = vmatprep.subr.mxu0 0.0
        %1017 = vmatpush1.msra.mxu0 0.0
        %1018 = vmatprep.subr.mxu0 0.0
        %1019 = vmatpush1.msra.mxu0 0.0
        %1020 = vmatprep.subr.mxu0 0.0
        %1021 = vmatpush1.msra.mxu0 0.0
        %1022 = vmatprep.subr.mxu0 0.0
        %1023 = vmatpush1.msra.mxu0 0.0
        %1024 = vmatprep.subr.mxu0 0.0
        %1025 = vmatpush1.msra.mxu0 0.0
        %1026 = vmatprep.subr.mxu0 0.0
        %1027 = vmatpush1.msra.mxu0 0.0
        %1028 = vmatprep.subr.mxu0 0.0
        %1029 = vmatpush1.msra.mxu0 0.0
        %1030 = vmatprep.subr.mxu0 0.0
        %1031 = vmatpush1.msra.mxu0 0.0
        %1032 = vmatprep.subr.mxu0 0.0
        %1033 = vmatpush1.msra.mxu0 0.0
        %1034 = vmatprep.subr.mxu0 0.0
        %1035 = vmatpush1.msra.mxu0 0.0
        %1036 = vmatprep.subr.mxu0 0.0
        %1037 = vmatpush1.msra.mxu0 0.0
        %1038 = vmatprep.subr.mxu0 0.0
        %1039 = vmatpush1.msra.mxu0 0.0
        %1040 = vmatprep.subr.mxu0 0.0
        %1041 = vmatpush1.msra.mxu0 0.0
        %1042 = vmatprep.subr.mxu0 0.0
        %1043 = vmatpush1.msra.mxu0 0.0
        %1044 = vmatprep.subr.mxu0 0.0
        %1045 = vmatpush1.msra.mxu0 0.0
        %1046 = vmatprep.subr.mxu0 0.0
        %v1047 = vand.u32 %v765, 4294901760
        %1048 = vmatpush1.msra.mxu0 %v1047
        %1049 = vmatprep.subr.mxu0 0.0
        %1050 = vmatpush2.msra.mxu0 0.0
        %1051 = vmatprep.subr.mxu0 0.0
        %1052 = vmatpush2.msra.mxu0 0.0
        %1053 = vmatprep.subr.mxu0 0.0
        %1054 = vmatpush2.msra.mxu0 0.0
        %1055 = vmatprep.subr.mxu0 0.0
        %1056 = vmatpush2.msra.mxu0 0.0
        %1057 = vmatprep.subr.mxu0 0.0
        %1058 = vmatpush2.msra.mxu0 0.0
        %1059 = vmatprep.subr.mxu0 0.0
        %1060 = vmatpush2.msra.mxu0 0.0
        %1061 = vmatprep.subr.mxu0 0.0
        %1062 = vmatpush2.msra.mxu0 0.0
        %1063 = vmatprep.subr.mxu0 0.0
        %1064 = vmatpush2.msra.mxu0 0.0
        %1065 = vmatprep.subr.mxu0 0.0
        %1066 = vmatpush2.msra.mxu0 0.0
        %1067 = vmatprep.subr.mxu0 0.0
        %1068 = vmatpush2.msra.mxu0 0.0
        %1069 = vmatprep.subr.mxu0 0.0
        %1070 = vmatpush2.msra.mxu0 0.0
        %1071 = vmatprep.subr.mxu0 0.0
        %1072 = vmatpush2.msra.mxu0 0.0
        %1073 = vmatprep.subr.mxu0 0.0
        %1074 = vmatpush2.msra.mxu0 0.0
        %1075 = vmatprep.subr.mxu0 0.0
        %1076 = vmatpush2.msra.mxu0 0.0
        %1077 = vmatprep.subr.mxu0 0.0
        %1078 = vmatpush2.msra.mxu0 0.0
        %1079 = vmatprep.subr.mxu0 0.0
        %1080 = vmatpush2.msra.mxu0 0.0
        %1081 = vmatprep.mubr.f32.mxu0 0.0
        %v1082 = vand.u32 %v758, 4294901760
        %v1083 = vsub.f32 %v758, %v1082
        %v1084 = vand.u32 %v1083, 4294901760
        %1085 = vmatmul.mubr.f32.gmra.mxu0 %v1084
        %v1086 = vpop.f32.mrf.mxu0
        %v1087 = vadd.f32 %v1006, %v1086
        %v1088 = vpop.f32.mrf.mxu0
        %1089 = vmatprep.mubr.f32.mxu0 0.0
        %v1090 = vand.u32 %v761, 4294901760
        %v1091 = vsub.f32 %v761, %v1090
        %v1092 = vand.u32 %v1091, 4294901760
        %1093 = vmatmul.mubr.f32.gmra.mxu0 %v1092
        %v1094 = vpop.f32.mrf.mxu0
        %v1095 = vadd.f32 %v1013, %v1094
        %v1096 = vpop.f32.mrf.mxu0
        %1097 = vdwg.mxu0
        %1098 = vmatprep.subr.mxu0 0.0
        %1099 = vmatpush1.msra.mxu0 0.0
        %1100 = vmatprep.subr.mxu0 0.0
        %1101 = vmatpush1.msra.mxu0 0.0
        %1102 = vmatprep.subr.mxu0 0.0
        %1103 = vmatpush1.msra.mxu0 0.0
        %1104 = vmatprep.subr.mxu0 0.0
        %1105 = vmatpush1.msra.mxu0 0.0
        %1106 = vmatprep.subr.mxu0 0.0
        %1107 = vmatpush1.msra.mxu0 0.0
        %1108 = vmatprep.subr.mxu0 0.0
        %1109 = vmatpush1.msra.mxu0 0.0
        %1110 = vmatprep.subr.mxu0 0.0
        %1111 = vmatpush1.msra.mxu0 0.0
        %1112 = vmatprep.subr.mxu0 0.0
        %1113 = vmatpush1.msra.mxu0 0.0
        %1114 = vmatprep.subr.mxu0 0.0
        %1115 = vmatpush1.msra.mxu0 0.0
        %1116 = vmatprep.subr.mxu0 0.0
        %1117 = vmatpush1.msra.mxu0 0.0
        %1118 = vmatprep.subr.mxu0 0.0
        %1119 = vmatpush1.msra.mxu0 0.0
        %1120 = vmatprep.subr.mxu0 0.0
        %1121 = vmatpush1.msra.mxu0 0.0
        %1122 = vmatprep.subr.mxu0 0.0
        %1123 = vmatpush1.msra.mxu0 0.0
        %1124 = vmatprep.subr.mxu0 0.0
        %1125 = vmatpush1.msra.mxu0 0.0
        %1126 = vmatprep.subr.mxu0 0.0
        %1127 = vmatpush1.msra.mxu0 0.0
        %1128 = vmatprep.subr.mxu0 0.0
        %v1129 = vand.u32 %v765, 4294901760
        %v1130 = vsub.f32 %v765, %v1129
        %v1131 = vand.u32 %v1130, 4294901760
        %1132 = vmatpush1.msra.mxu0 %v1131
        %1133 = vmatprep.subr.mxu0 0.0
        %1134 = vmatpush2.msra.mxu0 0.0
        %1135 = vmatprep.subr.mxu0 0.0
        %1136 = vmatpush2.msra.mxu0 0.0
        %1137 = vmatprep.subr.mxu0 0.0
        %1138 = vmatpush2.msra.mxu0 0.0
        %1139 = vmatprep.subr.mxu0 0.0
        %1140 = vmatpush2.msra.mxu0 0.0
        %1141 = vmatprep.subr.mxu0 0.0
        %1142 = vmatpush2.msra.mxu0 0.0
        %1143 = vmatprep.subr.mxu0 0.0
        %1144 = vmatpush2.msra.mxu0 0.0
        %1145 = vmatprep.subr.mxu0 0.0
        %1146 = vmatpush2.msra.mxu0 0.0
        %1147 = vmatprep.subr.mxu0 0.0
        %1148 = vmatpush2.msra.mxu0 0.0
        %1149 = vmatprep.subr.mxu0 0.0
        %1150 = vmatpush2.msra.mxu0 0.0
        %1151 = vmatprep.subr.mxu0 0.0
        %1152 = vmatpush2.msra.mxu0 0.0
        %1153 = vmatprep.subr.mxu0 0.0
        %1154 = vmatpush2.msra.mxu0 0.0
        %1155 = vmatprep.subr.mxu0 0.0
        %1156 = vmatpush2.msra.mxu0 0.0
        %1157 = vmatprep.subr.mxu0 0.0
        %1158 = vmatpush2.msra.mxu0 0.0
        %1159 = vmatprep.subr.mxu0 0.0
        %1160 = vmatpush2.msra.mxu0 0.0
        %1161 = vmatprep.subr.mxu0 0.0
        %1162 = vmatpush2.msra.mxu0 0.0
        %1163 = vmatprep.subr.mxu0 0.0
        %1164 = vmatpush2.msra.mxu0 0.0
        %1165 = vmatprep.mubr.f32.mxu0 0.0
        %v1166 = vand.u32 %v758, 4294901760
        %1167 = vmatmul.mubr.f32.gmra.mxu0 %v1166
        %v1168 = vpop.f32.mrf.mxu0
        %v1169 = vadd.f32 %v1087, %v1168
        %v1170 = vpop.f32.mrf.mxu0
        %1171 = vmatprep.mubr.f32.mxu0 0.0
        %v1172 = vand.u32 %v761, 4294901760
        %1173 = vmatmul.mubr.f32.gmra.mxu0 %v1172
        %v1174 = vpop.f32.mrf.mxu0
        %v1175 = vadd.f32 %v1095, %v1174
        %v1176 = vpop.f32.mrf.mxu0
        %1177 = vdwg.mxu0
        %1178 = vmatprep.subr.mxu0 0.0
        %1179 = vmatpush1.msra.mxu0 0.0
        %1180 = vmatprep.subr.mxu0 0.0
        %1181 = vmatpush1.msra.mxu0 0.0
        %1182 = vmatprep.subr.mxu0 0.0
        %1183 = vmatpush1.msra.mxu0 0.0
        %1184 = vmatprep.subr.mxu0 0.0
        %1185 = vmatpush1.msra.mxu0 0.0
        %1186 = vmatprep.subr.mxu0 0.0
        %1187 = vmatpush1.msra.mxu0 0.0
        %1188 = vmatprep.subr.mxu0 0.0
        %1189 = vmatpush1.msra.mxu0 0.0
        %1190 = vmatprep.subr.mxu0 0.0
        %1191 = vmatpush1.msra.mxu0 0.0
        %1192 = vmatprep.subr.mxu0 0.0
        %1193 = vmatpush1.msra.mxu0 0.0
        %1194 = vmatprep.subr.mxu0 0.0
        %1195 = vmatpush1.msra.mxu0 0.0
        %1196 = vmatprep.subr.mxu0 0.0
        %1197 = vmatpush1.msra.mxu0 0.0
        %1198 = vmatprep.subr.mxu0 0.0
        %1199 = vmatpush1.msra.mxu0 0.0
        %1200 = vmatprep.subr.mxu0 0.0
        %1201 = vmatpush1.msra.mxu0 0.0
        %1202 = vmatprep.subr.mxu0 0.0
        %1203 = vmatpush1.msra.mxu0 0.0
        %1204 = vmatprep.subr.mxu0 0.0
        %1205 = vmatpush1.msra.mxu0 0.0
        %1206 = vmatprep.subr.mxu0 0.0
        %1207 = vmatpush1.msra.mxu0 0.0
        %1208 = vmatprep.subr.mxu0 0.0
        %v1209 = vand.u32 %v765, 4294901760
        %1210 = vmatpush1.msra.mxu0 %v1209
        %1211 = vmatprep.subr.mxu0 0.0
        %1212 = vmatpush2.msra.mxu0 0.0
        %1213 = vmatprep.subr.mxu0 0.0
        %1214 = vmatpush2.msra.mxu0 0.0
        %1215 = vmatprep.subr.mxu0 0.0
        %1216 = vmatpush2.msra.mxu0 0.0
        %1217 = vmatprep.subr.mxu0 0.0
        %1218 = vmatpush2.msra.mxu0 0.0
        %1219 = vmatprep.subr.mxu0 0.0
        %1220 = vmatpush2.msra.mxu0 0.0
        %1221 = vmatprep.subr.mxu0 0.0
        %1222 = vmatpush2.msra.mxu0 0.0
        %1223 = vmatprep.subr.mxu0 0.0
        %1224 = vmatpush2.msra.mxu0 0.0
        %1225 = vmatprep.subr.mxu0 0.0
        %1226 = vmatpush2.msra.mxu0 0.0
        %1227 = vmatprep.subr.mxu0 0.0
        %1228 = vmatpush2.msra.mxu0 0.0
        %1229 = vmatprep.subr.mxu0 0.0
        %1230 = vmatpush2.msra.mxu0 0.0
        %1231 = vmatprep.subr.mxu0 0.0
        %1232 = vmatpush2.msra.mxu0 0.0
        %1233 = vmatprep.subr.mxu0 0.0
        %1234 = vmatpush2.msra.mxu0 0.0
        %1235 = vmatprep.subr.mxu0 0.0
        %1236 = vmatpush2.msra.mxu0 0.0
        %1237 = vmatprep.subr.mxu0 0.0
        %1238 = vmatpush2.msra.mxu0 0.0
        %1239 = vmatprep.subr.mxu0 0.0
        %1240 = vmatpush2.msra.mxu0 0.0
        %1241 = vmatprep.subr.mxu0 0.0
        %1242 = vmatpush2.msra.mxu0 0.0
        %1243 = vmatprep.mubr.f32.mxu0 0.0
        %v1244 = vand.u32 %v758, 4294901760
        %1245 = vmatmul.mubr.f32.gmra.mxu0 %v1244
        %v1246 = vpop.f32.mrf.mxu0
        %v1247 = vadd.f32 %v1169, %v1246
        %v1248 = vpop.f32.mrf.mxu0
        %1249 = vmatprep.mubr.f32.mxu0 0.0
        %v1250 = vand.u32 %v761, 4294901760
        %1251 = vmatmul.mubr.f32.gmra.mxu0 %v1250
        %v1252 = vpop.f32.mrf.mxu0
        %v1253 = vadd.f32 %v1175, %v1252
        %v1254 = vpop.f32.mrf.mxu0
        %1255 = vdwg.mxu0
        %v1256 = vsub.f32 %v288, %v1247
        %v1257 = vsub.f32 %v289, %v1253
        %v1258 = vmul.f32 %v1256, %v1256
        %v1259 = vmul.f32 %v1257, %v1257
        %1260 = vmatprep.subr.mxu0 0.0
        %1261 = vmatpush1.msra.mxu0 0.0
        %1262 = vmatprep.subr.mxu0 0.0
        %1263 = vmatpush1.msra.mxu0 0.0
        %1264 = vmatprep.subr.mxu0 0.0
        %1265 = vmatpush1.msra.mxu0 0.0
        %1266 = vmatprep.subr.mxu0 0.0
        %1267 = vmatpush1.msra.mxu0 0.0
        %1268 = vmatprep.subr.mxu0 0.0
        %1269 = vmatpush1.msra.mxu0 0.0
        %1270 = vmatprep.subr.mxu0 0.0
        %1271 = vmatpush1.msra.mxu0 0.0
        %1272 = vmatprep.subr.mxu0 0.0
        %1273 = vmatpush1.msra.mxu0 0.0
        %1274 = vmatprep.subr.mxu0 0.0
        %1275 = vmatpush1.msra.mxu0 0.0
        %1276 = vmatprep.subr.mxu0 0.0
        %1277 = vmatpush1.msra.mxu0 0.0
        %1278 = vmatprep.subr.mxu0 0.0
        %1279 = vmatpush1.msra.mxu0 0.0
        %1280 = vmatprep.subr.mxu0 0.0
        %1281 = vmatpush1.msra.mxu0 0.0
        %1282 = vmatprep.subr.mxu0 0.0
        %1283 = vmatpush1.msra.mxu0 0.0
        %1284 = vmatprep.subr.mxu0 0.0
        %1285 = vmatpush1.msra.mxu0 0.0
        %1286 = vmatprep.subr.mxu0 0.0
        %1287 = vmatpush1.msra.mxu0 0.0
        %1288 = vmatprep.subr.mxu0 0.0
        %v1289 = vand.u32 %v1259, 4294901760
        %1290 = vmatpush1.msra.mxu0 %v1289
        %1291 = vmatprep.subr.mxu0 0.0
        %v1292 = vand.u32 %v1258, 4294901760
        %1293 = vmatpush1.msra.mxu0 %v1292
        %1294 = vmatprep.subr.mxu0 0.0
        %1295 = vmatpush2.msra.mxu0 0.0
        %1296 = vmatprep.subr.mxu0 0.0
        %1297 = vmatpush2.msra.mxu0 0.0
        %1298 = vmatprep.subr.mxu0 0.0
        %1299 = vmatpush2.msra.mxu0 0.0
        %1300 = vmatprep.subr.mxu0 0.0
        %1301 = vmatpush2.msra.mxu0 0.0
        %1302 = vmatprep.subr.mxu0 0.0
        %1303 = vmatpush2.msra.mxu0 0.0
        %1304 = vmatprep.subr.mxu0 0.0
        %1305 = vmatpush2.msra.mxu0 0.0
        %1306 = vmatprep.subr.mxu0 0.0
        %1307 = vmatpush2.msra.mxu0 0.0
        %1308 = vmatprep.subr.mxu0 0.0
        %1309 = vmatpush2.msra.mxu0 0.0
        %1310 = vmatprep.subr.mxu0 0.0
        %1311 = vmatpush2.msra.mxu0 0.0
        %1312 = vmatprep.subr.mxu0 0.0
        %1313 = vmatpush2.msra.mxu0 0.0
        %1314 = vmatprep.subr.mxu0 0.0
        %1315 = vmatpush2.msra.mxu0 0.0
        %1316 = vmatprep.subr.mxu0 0.0
        %1317 = vmatpush2.msra.mxu0 0.0
        %1318 = vmatprep.subr.mxu0 0.0
        %1319 = vmatpush2.msra.mxu0 0.0
        %1320 = vmatprep.subr.mxu0 0.0
        %1321 = vmatpush2.msra.mxu0 0.0
        %1322 = vmatprep.subr.mxu0 0.0
        %1323 = vmatpush2.msra.mxu0 0.0
        %1324 = vmatprep.subr.mxu0 0.0
        %1325 = vmatpush2.msra.mxu0 0.0
        %1326 = vmatprep.mubr.f32.mxu0 0.0
        %v1327 = vand.u32 %v295, 4294901760
        %v1328 = vsub.f32 %v295, %v1327
        %v1329 = vand.u32 %v1328, 4294901760
        %v1330 = vsub.f32 %v1328, %v1329
        %v1331 = vand.u32 %v1330, 4294901760
        %1332 = vmatmul.mubr.f32.gmra.mxu0 %v1331
        %v1333 = vpop.f32.mrf.mxu0
        %v1334 = vadd.f32 1e-06, %v1333
        %v1335 = vpop.f32.mrf.mxu0
        %1336 = vdwg.mxu0
        %1337 = vmatprep.subr.mxu0 0.0
        %1338 = vmatpush1.msra.mxu0 0.0
        %1339 = vmatprep.subr.mxu0 0.0
        %1340 = vmatpush1.msra.mxu0 0.0
        %1341 = vmatprep.subr.mxu0 0.0
        %1342 = vmatpush1.msra.mxu0 0.0
        %1343 = vmatprep.subr.mxu0 0.0
        %1344 = vmatpush1.msra.mxu0 0.0
        %1345 = vmatprep.subr.mxu0 0.0
        %1346 = vmatpush1.msra.mxu0 0.0
        %1347 = vmatprep.subr.mxu0 0.0
        %1348 = vmatpush1.msra.mxu0 0.0
        %1349 = vmatprep.subr.mxu0 0.0
        %1350 = vmatpush1.msra.mxu0 0.0
        %1351 = vmatprep.subr.mxu0 0.0
        %1352 = vmatpush1.msra.mxu0 0.0
        %1353 = vmatprep.subr.mxu0 0.0
        %1354 = vmatpush1.msra.mxu0 0.0
        %1355 = vmatprep.subr.mxu0 0.0
        %1356 = vmatpush1.msra.mxu0 0.0
        %1357 = vmatprep.subr.mxu0 0.0
        %1358 = vmatpush1.msra.mxu0 0.0
        %1359 = vmatprep.subr.mxu0 0.0
        %1360 = vmatpush1.msra.mxu0 0.0
        %1361 = vmatprep.subr.mxu0 0.0
        %1362 = vmatpush1.msra.mxu0 0.0
        %1363 = vmatprep.subr.mxu0 0.0
        %1364 = vmatpush1.msra.mxu0 0.0
        %1365 = vmatprep.subr.mxu0 0.0
        %v1366 = vand.u32 %v1259, 4294901760
        %v1367 = vsub.f32 %v1259, %v1366
        %v1368 = vand.u32 %v1367, 4294901760
        %v1369 = vsub.f32 %v1367, %v1368
        %v1370 = vand.u32 %v1369, 4294901760
        %1371 = vmatpush1.msra.mxu0 %v1370
        %1372 = vmatprep.subr.mxu0 0.0
        %v1373 = vand.u32 %v1258, 4294901760
        %v1374 = vsub.f32 %v1258, %v1373
        %v1375 = vand.u32 %v1374, 4294901760
        %v1376 = vsub.f32 %v1374, %v1375
        %v1377 = vand.u32 %v1376, 4294901760
        %1378 = vmatpush1.msra.mxu0 %v1377
        %1379 = vmatprep.subr.mxu0 0.0
        %1380 = vmatpush2.msra.mxu0 0.0
        %1381 = vmatprep.subr.mxu0 0.0
        %1382 = vmatpush2.msra.mxu0 0.0
        %1383 = vmatprep.subr.mxu0 0.0
        %1384 = vmatpush2.msra.mxu0 0.0
        %1385 = vmatprep.subr.mxu0 0.0
        %1386 = vmatpush2.msra.mxu0 0.0
        %1387 = vmatprep.subr.mxu0 0.0
        %1388 = vmatpush2.msra.mxu0 0.0
        %1389 = vmatprep.subr.mxu0 0.0
        %1390 = vmatpush2.msra.mxu0 0.0
        %1391 = vmatprep.subr.mxu0 0.0
        %1392 = vmatpush2.msra.mxu0 0.0
        %1393 = vmatprep.subr.mxu0 0.0
        %1394 = vmatpush2.msra.mxu0 0.0
        %1395 = vmatprep.subr.mxu0 0.0
        %1396 = vmatpush2.msra.mxu0 0.0
        %1397 = vmatprep.subr.mxu0 0.0
        %1398 = vmatpush2.msra.mxu0 0.0
        %1399 = vmatprep.subr.mxu0 0.0
        %1400 = vmatpush2.msra.mxu0 0.0
        %1401 = vmatprep.subr.mxu0 0.0
        %1402 = vmatpush2.msra.mxu0 0.0
        %1403 = vmatprep.subr.mxu0 0.0
        %1404 = vmatpush2.msra.mxu0 0.0
        %1405 = vmatprep.subr.mxu0 0.0
        %1406 = vmatpush2.msra.mxu0 0.0
        %1407 = vmatprep.subr.mxu0 0.0
        %1408 = vmatpush2.msra.mxu0 0.0
        %1409 = vmatprep.subr.mxu0 0.0
        %1410 = vmatpush2.msra.mxu0 0.0
        %1411 = vmatprep.mubr.f32.mxu0 0.0
        %v1412 = vand.u32 %v295, 4294901760
        %1413 = vmatmul.mubr.f32.gmra.mxu0 %v1412
        %v1414 = vpop.f32.mrf.mxu0
        %v1415 = vadd.f32 %v1334, %v1414
        %v1416 = vpop.f32.mrf.mxu0
        %1417 = vdwg.mxu0
        %1418 = vmatprep.subr.mxu0 0.0
        %1419 = vmatpush1.msra.mxu0 0.0
        %1420 = vmatprep.subr.mxu0 0.0
        %1421 = vmatpush1.msra.mxu0 0.0
        %1422 = vmatprep.subr.mxu0 0.0
        %1423 = vmatpush1.msra.mxu0 0.0
        %1424 = vmatprep.subr.mxu0 0.0
        %1425 = vmatpush1.msra.mxu0 0.0
        %1426 = vmatprep.subr.mxu0 0.0
        %1427 = vmatpush1.msra.mxu0 0.0
        %1428 = vmatprep.subr.mxu0 0.0
        %1429 = vmatpush1.msra.mxu0 0.0
        %1430 = vmatprep.subr.mxu0 0.0
        %1431 = vmatpush1.msra.mxu0 0.0
        %1432 = vmatprep.subr.mxu0 0.0
        %1433 = vmatpush1.msra.mxu0 0.0
        %1434 = vmatprep.subr.mxu0 0.0
        %1435 = vmatpush1.msra.mxu0 0.0
        %1436 = vmatprep.subr.mxu0 0.0
        %1437 = vmatpush1.msra.mxu0 0.0
        %1438 = vmatprep.subr.mxu0 0.0
        %1439 = vmatpush1.msra.mxu0 0.0
        %1440 = vmatprep.subr.mxu0 0.0
        %1441 = vmatpush1.msra.mxu0 0.0
        %1442 = vmatprep.subr.mxu0 0.0
        %1443 = vmatpush1.msra.mxu0 0.0
        %1444 = vmatprep.subr.mxu0 0.0
        %1445 = vmatpush1.msra.mxu0 0.0
        %1446 = vmatprep.subr.mxu0 0.0
        %v1447 = vand.u32 %v1259, 4294901760
        %v1448 = vsub.f32 %v1259, %v1447
        %1449 = vmatpush1.msra.mxu0 %v1448
        %1450 = vmatprep.subr.mxu0 0.0
        %v1451 = vand.u32 %v1258, 4294901760
        %v1452 = vsub.f32 %v1258, %v1451
        %1453 = vmatpush1.msra.mxu0 %v1452
        %1454 = vmatprep.subr.mxu0 0.0
        %1455 = vmatpush2.msra.mxu0 0.0
        %1456 = vmatprep.subr.mxu0 0.0
        %1457 = vmatpush2.msra.mxu0 0.0
        %1458 = vmatprep.subr.mxu0 0.0
        %1459 = vmatpush2.msra.mxu0 0.0
        %1460 = vmatprep.subr.mxu0 0.0
        %1461 = vmatpush2.msra.mxu0 0.0
        %1462 = vmatprep.subr.mxu0 0.0
        %1463 = vmatpush2.msra.mxu0 0.0
        %1464 = vmatprep.subr.mxu0 0.0
        %1465 = vmatpush2.msra.mxu0 0.0
        %1466 = vmatprep.subr.mxu0 0.0
        %1467 = vmatpush2.msra.mxu0 0.0
        %1468 = vmatprep.subr.mxu0 0.0
        %1469 = vmatpush2.msra.mxu0 0.0
        %1470 = vmatprep.subr.mxu0 0.0
        %1471 = vmatpush2.msra.mxu0 0.0
        %1472 = vmatprep.subr.mxu0 0.0
        %1473 = vmatpush2.msra.mxu0 0.0
        %1474 = vmatprep.subr.mxu0 0.0
        %1475 = vmatpush2.msra.mxu0 0.0
        %1476 = vmatprep.subr.mxu0 0.0
        %1477 = vmatpush2.msra.mxu0 0.0
        %1478 = vmatprep.subr.mxu0 0.0
        %1479 = vmatpush2.msra.mxu0 0.0
        %1480 = vmatprep.subr.mxu0 0.0
        %1481 = vmatpush2.msra.mxu0 0.0
        %1482 = vmatprep.subr.mxu0 0.0
        %1483 = vmatpush2.msra.mxu0 0.0
        %1484 = vmatprep.subr.mxu0 0.0
        %1485 = vmatpush2.msra.mxu0 0.0
        %1486 = vmatprep.mubr.f32.mxu0 0.0
        %v1487 = vand.u32 %v295, 4294901760
        %v1488 = vsub.f32 %v295, %v1487
        %1489 = vmatmul.mubr.f32.gmra.mxu0 %v1488
        %v1490 = vpop.f32.mrf.mxu0
        %v1491 = vadd.f32 %v1415, %v1490
        %v1492 = vpop.f32.mrf.mxu0
        %1493 = vdwg.mxu0
        %1494 = vmatprep.subr.mxu0 0.0
        %1495 = vmatpush1.msra.mxu0 0.0
        %1496 = vmatprep.subr.mxu0 0.0
        %1497 = vmatpush1.msra.mxu0 0.0
        %1498 = vmatprep.subr.mxu0 0.0
        %1499 = vmatpush1.msra.mxu0 0.0
        %1500 = vmatprep.subr.mxu0 0.0
        %1501 = vmatpush1.msra.mxu0 0.0
        %1502 = vmatprep.subr.mxu0 0.0
        %1503 = vmatpush1.msra.mxu0 0.0
        %1504 = vmatprep.subr.mxu0 0.0
        %1505 = vmatpush1.msra.mxu0 0.0
        %1506 = vmatprep.subr.mxu0 0.0
        %1507 = vmatpush1.msra.mxu0 0.0
        %1508 = vmatprep.subr.mxu0 0.0
        %1509 = vmatpush1.msra.mxu0 0.0
        %1510 = vmatprep.subr.mxu0 0.0
        %1511 = vmatpush1.msra.mxu0 0.0
        %1512 = vmatprep.subr.mxu0 0.0
        %1513 = vmatpush1.msra.mxu0 0.0
        %1514 = vmatprep.subr.mxu0 0.0
        %1515 = vmatpush1.msra.mxu0 0.0
        %1516 = vmatprep.subr.mxu0 0.0
        %1517 = vmatpush1.msra.mxu0 0.0
        %1518 = vmatprep.subr.mxu0 0.0
        %1519 = vmatpush1.msra.mxu0 0.0
        %1520 = vmatprep.subr.mxu0 0.0
        %1521 = vmatpush1.msra.mxu0 0.0
        %1522 = vmatprep.subr.mxu0 0.0
        %v1523 = vand.u32 %v1259, 4294901760
        %1524 = vmatpush1.msra.mxu0 %v1523
        %1525 = vmatprep.subr.mxu0 0.0
        %v1526 = vand.u32 %v1258, 4294901760
        %1527 = vmatpush1.msra.mxu0 %v1526
        %1528 = vmatprep.subr.mxu0 0.0
        %1529 = vmatpush2.msra.mxu0 0.0
        %1530 = vmatprep.subr.mxu0 0.0
        %1531 = vmatpush2.msra.mxu0 0.0
        %1532 = vmatprep.subr.mxu0 0.0
        %1533 = vmatpush2.msra.mxu0 0.0
        %1534 = vmatprep.subr.mxu0 0.0
        %1535 = vmatpush2.msra.mxu0 0.0
        %1536 = vmatprep.subr.mxu0 0.0
        %1537 = vmatpush2.msra.mxu0 0.0
        %1538 = vmatprep.subr.mxu0 0.0
        %1539 = vmatpush2.msra.mxu0 0.0
        %1540 = vmatprep.subr.mxu0 0.0
        %1541 = vmatpush2.msra.mxu0 0.0
        %1542 = vmatprep.subr.mxu0 0.0
        %1543 = vmatpush2.msra.mxu0 0.0
        %1544 = vmatprep.subr.mxu0 0.0
        %1545 = vmatpush2.msra.mxu0 0.0
        %1546 = vmatprep.subr.mxu0 0.0
        %1547 = vmatpush2.msra.mxu0 0.0
        %1548 = vmatprep.subr.mxu0 0.0
        %1549 = vmatpush2.msra.mxu0 0.0
        %1550 = vmatprep.subr.mxu0 0.0
        %1551 = vmatpush2.msra.mxu0 0.0
        %1552 = vmatprep.subr.mxu0 0.0
        %1553 = vmatpush2.msra.mxu0 0.0
        %1554 = vmatprep.subr.mxu0 0.0
        %1555 = vmatpush2.msra.mxu0 0.0
        %1556 = vmatprep.subr.mxu0 0.0
        %1557 = vmatpush2.msra.mxu0 0.0
        %1558 = vmatprep.subr.mxu0 0.0
        %1559 = vmatpush2.msra.mxu0 0.0
        %1560 = vmatprep.mubr.f32.mxu0 0.0
        %v1561 = vand.u32 %v295, 4294901760
        %v1562 = vsub.f32 %v295, %v1561
        %v1563 = vand.u32 %v1562, 4294901760
        %1564 = vmatmul.mubr.f32.gmra.mxu0 %v1563
        %v1565 = vpop.f32.mrf.mxu0
        %v1566 = vadd.f32 %v1491, %v1565
        %v1567 = vpop.f32.mrf.mxu0
        %1568 = vdwg.mxu0
        %1569 = vmatprep.subr.mxu0 0.0
        %1570 = vmatpush1.msra.mxu0 0.0
        %1571 = vmatprep.subr.mxu0 0.0
        %1572 = vmatpush1.msra.mxu0 0.0
        %1573 = vmatprep.subr.mxu0 0.0
        %1574 = vmatpush1.msra.mxu0 0.0
        %1575 = vmatprep.subr.mxu0 0.0
        %1576 = vmatpush1.msra.mxu0 0.0
        %1577 = vmatprep.subr.mxu0 0.0
        %1578 = vmatpush1.msra.mxu0 0.0
        %1579 = vmatprep.subr.mxu0 0.0
        %1580 = vmatpush1.msra.mxu0 0.0
        %1581 = vmatprep.subr.mxu0 0.0
        %1582 = vmatpush1.msra.mxu0 0.0
        %1583 = vmatprep.subr.mxu0 0.0
        %1584 = vmatpush1.msra.mxu0 0.0
        %1585 = vmatprep.subr.mxu0 0.0
        %1586 = vmatpush1.msra.mxu0 0.0
        %1587 = vmatprep.subr.mxu0 0.0
        %1588 = vmatpush1.msra.mxu0 0.0
        %1589 = vmatprep.subr.mxu0 0.0
        %1590 = vmatpush1.msra.mxu0 0.0
        %1591 = vmatprep.subr.mxu0 0.0
        %1592 = vmatpush1.msra.mxu0 0.0
        %1593 = vmatprep.subr.mxu0 0.0
        %1594 = vmatpush1.msra.mxu0 0.0
        %1595 = vmatprep.subr.mxu0 0.0
        %1596 = vmatpush1.msra.mxu0 0.0
        %1597 = vmatprep.subr.mxu0 0.0
        %v1598 = vand.u32 %v1259, 4294901760
        %v1599 = vsub.f32 %v1259, %v1598
        %v1600 = vand.u32 %v1599, 4294901760
        %1601 = vmatpush1.msra.mxu0 %v1600
        %1602 = vmatprep.subr.mxu0 0.0
        %v1603 = vand.u32 %v1258, 4294901760
        %v1604 = vsub.f32 %v1258, %v1603
        %v1605 = vand.u32 %v1604, 4294901760
        %1606 = vmatpush1.msra.mxu0 %v1605
        %1607 = vmatprep.subr.mxu0 0.0
        %1608 = vmatpush2.msra.mxu0 0.0
        %1609 = vmatprep.subr.mxu0 0.0
        %1610 = vmatpush2.msra.mxu0 0.0
        %1611 = vmatprep.subr.mxu0 0.0
        %1612 = vmatpush2.msra.mxu0 0.0
        %1613 = vmatprep.subr.mxu0 0.0
        %1614 = vmatpush2.msra.mxu0 0.0
        %1615 = vmatprep.subr.mxu0 0.0
        %1616 = vmatpush2.msra.mxu0 0.0
        %1617 = vmatprep.subr.mxu0 0.0
        %1618 = vmatpush2.msra.mxu0 0.0
        %1619 = vmatprep.subr.mxu0 0.0
        %1620 = vmatpush2.msra.mxu0 0.0
        %1621 = vmatprep.subr.mxu0 0.0
        %1622 = vmatpush2.msra.mxu0 0.0
        %1623 = vmatprep.subr.mxu0 0.0
        %1624 = vmatpush2.msra.mxu0 0.0
        %1625 = vmatprep.subr.mxu0 0.0
        %1626 = vmatpush2.msra.mxu0 0.0
        %1627 = vmatprep.subr.mxu0 0.0
        %1628 = vmatpush2.msra.mxu0 0.0
        %1629 = vmatprep.subr.mxu0 0.0
        %1630 = vmatpush2.msra.mxu0 0.0
        %1631 = vmatprep.subr.mxu0 0.0
        %1632 = vmatpush2.msra.mxu0 0.0
        %1633 = vmatprep.subr.mxu0 0.0
        %1634 = vmatpush2.msra.mxu0 0.0
        %1635 = vmatprep.subr.mxu0 0.0
        %1636 = vmatpush2.msra.mxu0 0.0
        %1637 = vmatprep.subr.mxu0 0.0
        %1638 = vmatpush2.msra.mxu0 0.0
        %1639 = vmatprep.mubr.f32.mxu0 0.0
        %v1640 = vand.u32 %v295, 4294901760
        %1641 = vmatmul.mubr.f32.gmra.mxu0 %v1640
        %v1642 = vpop.f32.mrf.mxu0
        %v1643 = vadd.f32 %v1566, %v1642
        %v1644 = vpop.f32.mrf.mxu0
        %1645 = vdwg.mxu0
        %1646 = vmatprep.subr.mxu0 0.0
        %1647 = vmatpush1.msra.mxu0 0.0
        %1648 = vmatprep.subr.mxu0 0.0
        %1649 = vmatpush1.msra.mxu0 0.0
        %1650 = vmatprep.subr.mxu0 0.0
        %1651 = vmatpush1.msra.mxu0 0.0
        %1652 = vmatprep.subr.mxu0 0.0
        %1653 = vmatpush1.msra.mxu0 0.0
        %1654 = vmatprep.subr.mxu0 0.0
        %1655 = vmatpush1.msra.mxu0 0.0
        %1656 = vmatprep.subr.mxu0 0.0
        %1657 = vmatpush1.msra.mxu0 0.0
        %1658 = vmatprep.subr.mxu0 0.0
        %1659 = vmatpush1.msra.mxu0 0.0
        %1660 = vmatprep.subr.mxu0 0.0
        %1661 = vmatpush1.msra.mxu0 0.0
        %1662 = vmatprep.subr.mxu0 0.0
        %1663 = vmatpush1.msra.mxu0 0.0
        %1664 = vmatprep.subr.mxu0 0.0
        %1665 = vmatpush1.msra.mxu0 0.0
        %1666 = vmatprep.subr.mxu0 0.0
        %1667 = vmatpush1.msra.mxu0 0.0
        %1668 = vmatprep.subr.mxu0 0.0
        %1669 = vmatpush1.msra.mxu0 0.0
        %1670 = vmatprep.subr.mxu0 0.0
        %1671 = vmatpush1.msra.mxu0 0.0
        %1672 = vmatprep.subr.mxu0 0.0
        %1673 = vmatpush1.msra.mxu0 0.0
        %1674 = vmatprep.subr.mxu0 0.0
        %v1675 = vand.u32 %v1259, 4294901760
        %1676 = vmatpush1.msra.mxu0 %v1675
        %1677 = vmatprep.subr.mxu0 0.0
        %v1678 = vand.u32 %v1258, 4294901760
        %1679 = vmatpush1.msra.mxu0 %v1678
        %1680 = vmatprep.subr.mxu0 0.0
        %1681 = vmatpush2.msra.mxu0 0.0
        %1682 = vmatprep.subr.mxu0 0.0
        %1683 = vmatpush2.msra.mxu0 0.0
        %1684 = vmatprep.subr.mxu0 0.0
        %1685 = vmatpush2.msra.mxu0 0.0
        %1686 = vmatprep.subr.mxu0 0.0
        %1687 = vmatpush2.msra.mxu0 0.0
        %1688 = vmatprep.subr.mxu0 0.0
        %1689 = vmatpush2.msra.mxu0 0.0
        %1690 = vmatprep.subr.mxu0 0.0
        %1691 = vmatpush2.msra.mxu0 0.0
        %1692 = vmatprep.subr.mxu0 0.0
        %1693 = vmatpush2.msra.mxu0 0.0
        %1694 = vmatprep.subr.mxu0 0.0
        %1695 = vmatpush2.msra.mxu0 0.0
        %1696 = vmatprep.subr.mxu0 0.0
        %1697 = vmatpush2.msra.mxu0 0.0
        %1698 = vmatprep.subr.mxu0 0.0
        %1699 = vmatpush2.msra.mxu0 0.0
        %1700 = vmatprep.subr.mxu0 0.0
        %1701 = vmatpush2.msra.mxu0 0.0
        %1702 = vmatprep.subr.mxu0 0.0
        %1703 = vmatpush2.msra.mxu0 0.0
        %1704 = vmatprep.subr.mxu0 0.0
        %1705 = vmatpush2.msra.mxu0 0.0
        %1706 = vmatprep.subr.mxu0 0.0
        %1707 = vmatpush2.msra.mxu0 0.0
        %1708 = vmatprep.subr.mxu0 0.0
        %1709 = vmatpush2.msra.mxu0 0.0
        %1710 = vmatprep.subr.mxu0 0.0
        %1711 = vmatpush2.msra.mxu0 0.0
        %1712 = vmatprep.mubr.f32.mxu0 0.0
        %v1713 = vand.u32 %v295, 4294901760
        %1714 = vmatmul.mubr.f32.gmra.mxu0 %v1713
        %v1715 = vpop.f32.mrf.mxu0
        %v1716 = vadd.f32 %v1643, %v1715
        %v1717 = vpop.f32.mrf.mxu0
        %1718 = vdwg.mxu0
        %v1719 = vrsqrt.pop %v1716
        %v1721 = vsel %vm763, %v1719, 0
        %1723 = vmatprep.subr.mxu0 0.0
        %1724 = vmatpush1.msra.mxu0 0.0
        %1725 = vmatprep.subr.mxu0 0.0
        %1726 = vmatpush1.msra.mxu0 0.0
        %1727 = vmatprep.subr.mxu0 0.0
        %1728 = vmatpush1.msra.mxu0 0.0
        %1729 = vmatprep.subr.mxu0 0.0
        %1730 = vmatpush1.msra.mxu0 0.0
        %1731 = vmatprep.subr.mxu0 0.0
        %1732 = vmatpush1.msra.mxu0 0.0
        %1733 = vmatprep.subr.mxu0 0.0
        %1734 = vmatpush1.msra.mxu0 0.0
        %1735 = vmatprep.subr.mxu0 0.0
        %1736 = vmatpush1.msra.mxu0 0.0
        %1737 = vmatprep.subr.mxu0 0.0
        %1738 = vmatpush1.msra.mxu0 0.0
        %1739 = vmatprep.subr.mxu0 0.0
        %1740 = vmatpush1.msra.mxu0 0.0
        %1741 = vmatprep.subr.mxu0 0.0
        %1742 = vmatpush1.msra.mxu0 0.0
        %1743 = vmatprep.subr.mxu0 0.0
        %1744 = vmatpush1.msra.mxu0 0.0
        %1745 = vmatprep.subr.mxu0 0.0
        %1746 = vmatpush1.msra.mxu0 0.0
        %1747 = vmatprep.subr.mxu0 0.0
        %1748 = vmatpush1.msra.mxu0 0.0
        %1749 = vmatprep.subr.mxu0 0.0
        %1750 = vmatpush1.msra.mxu0 0.0
        %1751 = vmatprep.subr.mxu0 0.0
        %1752 = vmatpush1.msra.mxu0 0.0
        %1753 = vmatprep.subr.mxu0 0.0
        %v1754 = vand.u32 %v1721, 4294901760
        %1755 = vmatpush1.msra.mxu0 %v1754
        %1756 = vmatprep.subr.mxu0 0.0
        %1757 = vmatpush2.msra.mxu0 0.0
        %1758 = vmatprep.subr.mxu0 0.0
        %1759 = vmatpush2.msra.mxu0 0.0
        %1760 = vmatprep.subr.mxu0 0.0
        %1761 = vmatpush2.msra.mxu0 0.0
        %1762 = vmatprep.subr.mxu0 0.0
        %1763 = vmatpush2.msra.mxu0 0.0
        %1764 = vmatprep.subr.mxu0 0.0
        %1765 = vmatpush2.msra.mxu0 0.0
        %1766 = vmatprep.subr.mxu0 0.0
        %1767 = vmatpush2.msra.mxu0 0.0
        %1768 = vmatprep.subr.mxu0 0.0
        %1769 = vmatpush2.msra.mxu0 0.0
        %1770 = vmatprep.subr.mxu0 0.0
        %1771 = vmatpush2.msra.mxu0 0.0
        %1772 = vmatprep.subr.mxu0 0.0
        %1773 = vmatpush2.msra.mxu0 0.0
        %1774 = vmatprep.subr.mxu0 0.0
        %1775 = vmatpush2.msra.mxu0 0.0
        %1776 = vmatprep.subr.mxu0 0.0
        %1777 = vmatpush2.msra.mxu0 0.0
        %1778 = vmatprep.subr.mxu0 0.0
        %1779 = vmatpush2.msra.mxu0 0.0
        %1780 = vmatprep.subr.mxu0 0.0
        %1781 = vmatpush2.msra.mxu0 0.0
        %1782 = vmatprep.subr.mxu0 0.0
        %1783 = vmatpush2.msra.mxu0 0.0
        %1784 = vmatprep.subr.mxu0 0.0
        %1785 = vmatpush2.msra.mxu0 0.0
        %1786 = vmatprep.subr.mxu0 0.0
        %1787 = vmatpush2.msra.mxu0 0.0
        %1788 = vmatprep.mubr.f32.mxu0 0.0
        %v1789 = vand.u32 %v758, 4294901760
        %v1790 = vsub.f32 %v758, %v1789
        %v1791 = vand.u32 %v1790, 4294901760
        %v1792 = vsub.f32 %v1790, %v1791
        %v1793 = vand.u32 %v1792, 4294901760
        %1794 = vmatmul.mubr.f32.gmra.mxu0 %v1793
        %v1795 = vpop.f32.mrf.mxu0
        %v1796 = vadd.f32 0.0, %v1795
        %v1797 = vpop.f32.mrf.mxu0
        %1798 = vmatprep.mubr.f32.mxu0 0.0
        %v1799 = vand.u32 %v761, 4294901760
        %v1800 = vsub.f32 %v761, %v1799
        %v1801 = vand.u32 %v1800, 4294901760
        %v1802 = vsub.f32 %v1800, %v1801
        %v1803 = vand.u32 %v1802, 4294901760
        %1804 = vmatmul.mubr.f32.gmra.mxu0 %v1803
        %v1805 = vpop.f32.mrf.mxu0
        %v1806 = vadd.f32 0.0, %v1805
        %v1807 = vpop.f32.mrf.mxu0
        %1808 = vdwg.mxu0
        %1809 = vmatprep.subr.mxu0 0.0
        %1810 = vmatpush1.msra.mxu0 0.0
        %1811 = vmatprep.subr.mxu0 0.0
        %1812 = vmatpush1.msra.mxu0 0.0
        %1813 = vmatprep.subr.mxu0 0.0
        %1814 = vmatpush1.msra.mxu0 0.0
        %1815 = vmatprep.subr.mxu0 0.0
        %1816 = vmatpush1.msra.mxu0 0.0
        %1817 = vmatprep.subr.mxu0 0.0
        %1818 = vmatpush1.msra.mxu0 0.0
        %1819 = vmatprep.subr.mxu0 0.0
        %1820 = vmatpush1.msra.mxu0 0.0
        %1821 = vmatprep.subr.mxu0 0.0
        %1822 = vmatpush1.msra.mxu0 0.0
        %1823 = vmatprep.subr.mxu0 0.0
        %1824 = vmatpush1.msra.mxu0 0.0
        %1825 = vmatprep.subr.mxu0 0.0
        %1826 = vmatpush1.msra.mxu0 0.0
        %1827 = vmatprep.subr.mxu0 0.0
        %1828 = vmatpush1.msra.mxu0 0.0
        %1829 = vmatprep.subr.mxu0 0.0
        %1830 = vmatpush1.msra.mxu0 0.0
        %1831 = vmatprep.subr.mxu0 0.0
        %1832 = vmatpush1.msra.mxu0 0.0
        %1833 = vmatprep.subr.mxu0 0.0
        %1834 = vmatpush1.msra.mxu0 0.0
        %1835 = vmatprep.subr.mxu0 0.0
        %1836 = vmatpush1.msra.mxu0 0.0
        %1837 = vmatprep.subr.mxu0 0.0
        %1838 = vmatpush1.msra.mxu0 0.0
        %1839 = vmatprep.subr.mxu0 0.0
        %v1840 = vand.u32 %v1721, 4294901760
        %v1841 = vsub.f32 %v1721, %v1840
        %v1842 = vand.u32 %v1841, 4294901760
        %v1843 = vsub.f32 %v1841, %v1842
        %v1844 = vand.u32 %v1843, 4294901760
        %1845 = vmatpush1.msra.mxu0 %v1844
        %1846 = vmatprep.subr.mxu0 0.0
        %1847 = vmatpush2.msra.mxu0 0.0
        %1848 = vmatprep.subr.mxu0 0.0
        %1849 = vmatpush2.msra.mxu0 0.0
        %1850 = vmatprep.subr.mxu0 0.0
        %1851 = vmatpush2.msra.mxu0 0.0
        %1852 = vmatprep.subr.mxu0 0.0
        %1853 = vmatpush2.msra.mxu0 0.0
        %1854 = vmatprep.subr.mxu0 0.0
        %1855 = vmatpush2.msra.mxu0 0.0
        %1856 = vmatprep.subr.mxu0 0.0
        %1857 = vmatpush2.msra.mxu0 0.0
        %1858 = vmatprep.subr.mxu0 0.0
        %1859 = vmatpush2.msra.mxu0 0.0
        %1860 = vmatprep.subr.mxu0 0.0
        %1861 = vmatpush2.msra.mxu0 0.0
        %1862 = vmatprep.subr.mxu0 0.0
        %1863 = vmatpush2.msra.mxu0 0.0
        %1864 = vmatprep.subr.mxu0 0.0
        %1865 = vmatpush2.msra.mxu0 0.0
        %1866 = vmatprep.subr.mxu0 0.0
        %1867 = vmatpush2.msra.mxu0 0.0
        %1868 = vmatprep.subr.mxu0 0.0
        %1869 = vmatpush2.msra.mxu0 0.0
        %1870 = vmatprep.subr.mxu0 0.0
        %1871 = vmatpush2.msra.mxu0 0.0
        %1872 = vmatprep.subr.mxu0 0.0
        %1873 = vmatpush2.msra.mxu0 0.0
        %1874 = vmatprep.subr.mxu0 0.0
        %1875 = vmatpush2.msra.mxu0 0.0
        %1876 = vmatprep.subr.mxu0 0.0
        %1877 = vmatpush2.msra.mxu0 0.0
        %1878 = vmatprep.mubr.f32.mxu0 0.0
        %v1879 = vand.u32 %v758, 4294901760
        %1880 = vmatmul.mubr.f32.gmra.mxu0 %v1879
        %v1881 = vpop.f32.mrf.mxu0
        %v1882 = vadd.f32 %v1796, %v1881
        %v1883 = vpop.f32.mrf.mxu0
        %1884 = vmatprep.mubr.f32.mxu0 0.0
        %v1885 = vand.u32 %v761, 4294901760
        %1886 = vmatmul.mubr.f32.gmra.mxu0 %v1885
        %v1887 = vpop.f32.mrf.mxu0
        %v1888 = vadd.f32 %v1806, %v1887
        %v1889 = vpop.f32.mrf.mxu0
        %1890 = vdwg.mxu0
        %1891 = vmatprep.subr.mxu0 0.0
        %1892 = vmatpush1.msra.mxu0 0.0
        %1893 = vmatprep.subr.mxu0 0.0
        %1894 = vmatpush1.msra.mxu0 0.0
        %1895 = vmatprep.subr.mxu0 0.0
        %1896 = vmatpush1.msra.mxu0 0.0
        %1897 = vmatprep.subr.mxu0 0.0
        %1898 = vmatpush1.msra.mxu0 0.0
        %1899 = vmatprep.subr.mxu0 0.0
        %1900 = vmatpush1.msra.mxu0 0.0
        %1901 = vmatprep.subr.mxu0 0.0
        %1902 = vmatpush1.msra.mxu0 0.0
        %1903 = vmatprep.subr.mxu0 0.0
        %1904 = vmatpush1.msra.mxu0 0.0
        %1905 = vmatprep.subr.mxu0 0.0
        %1906 = vmatpush1.msra.mxu0 0.0
        %1907 = vmatprep.subr.mxu0 0.0
        %1908 = vmatpush1.msra.mxu0 0.0
        %1909 = vmatprep.subr.mxu0 0.0
        %1910 = vmatpush1.msra.mxu0 0.0
        %1911 = vmatprep.subr.mxu0 0.0
        %1912 = vmatpush1.msra.mxu0 0.0
        %1913 = vmatprep.subr.mxu0 0.0
        %1914 = vmatpush1.msra.mxu0 0.0
        %1915 = vmatprep.subr.mxu0 0.0
        %1916 = vmatpush1.msra.mxu0 0.0
        %1917 = vmatprep.subr.mxu0 0.0
        %1918 = vmatpush1.msra.mxu0 0.0
        %1919 = vmatprep.subr.mxu0 0.0
        %1920 = vmatpush1.msra.mxu0 0.0
        %1921 = vmatprep.subr.mxu0 0.0
        %v1922 = vand.u32 %v1721, 4294901760
        %v1923 = vsub.f32 %v1721, %v1922
        %1924 = vmatpush1.msra.mxu0 %v1923
        %1925 = vmatprep.subr.mxu0 0.0
        %1926 = vmatpush2.msra.mxu0 0.0
        %1927 = vmatprep.subr.mxu0 0.0
        %1928 = vmatpush2.msra.mxu0 0.0
        %1929 = vmatprep.subr.mxu0 0.0
        %1930 = vmatpush2.msra.mxu0 0.0
        %1931 = vmatprep.subr.mxu0 0.0
        %1932 = vmatpush2.msra.mxu0 0.0
        %1933 = vmatprep.subr.mxu0 0.0
        %1934 = vmatpush2.msra.mxu0 0.0
        %1935 = vmatprep.subr.mxu0 0.0
        %1936 = vmatpush2.msra.mxu0 0.0
        %1937 = vmatprep.subr.mxu0 0.0
        %1938 = vmatpush2.msra.mxu0 0.0
        %1939 = vmatprep.subr.mxu0 0.0
        %1940 = vmatpush2.msra.mxu0 0.0
        %1941 = vmatprep.subr.mxu0 0.0
        %1942 = vmatpush2.msra.mxu0 0.0
        %1943 = vmatprep.subr.mxu0 0.0
        %1944 = vmatpush2.msra.mxu0 0.0
        %1945 = vmatprep.subr.mxu0 0.0
        %1946 = vmatpush2.msra.mxu0 0.0
        %1947 = vmatprep.subr.mxu0 0.0
        %1948 = vmatpush2.msra.mxu0 0.0
        %1949 = vmatprep.subr.mxu0 0.0
        %1950 = vmatpush2.msra.mxu0 0.0
        %1951 = vmatprep.subr.mxu0 0.0
        %1952 = vmatpush2.msra.mxu0 0.0
        %1953 = vmatprep.subr.mxu0 0.0
        %1954 = vmatpush2.msra.mxu0 0.0
        %1955 = vmatprep.subr.mxu0 0.0
        %1956 = vmatpush2.msra.mxu0 0.0
        %1957 = vmatprep.mubr.f32.mxu0 0.0
        %v1958 = vand.u32 %v758, 4294901760
        %v1959 = vsub.f32 %v758, %v1958
        %1960 = vmatmul.mubr.f32.gmra.mxu0 %v1959
        %v1961 = vpop.f32.mrf.mxu0
        %v1962 = vadd.f32 %v1882, %v1961
        %v1963 = vpop.f32.mrf.mxu0
        %1964 = vmatprep.mubr.f32.mxu0 0.0
        %v1965 = vand.u32 %v761, 4294901760
        %v1966 = vsub.f32 %v761, %v1965
        %1967 = vmatmul.mubr.f32.gmra.mxu0 %v1966
        %v1968 = vpop.f32.mrf.mxu0
        %v1969 = vadd.f32 %v1888, %v1968
        %v1970 = vpop.f32.mrf.mxu0
        %1971 = vdwg.mxu0
        %1972 = vmatprep.subr.mxu0 0.0
        %1973 = vmatpush1.msra.mxu0 0.0
        %1974 = vmatprep.subr.mxu0 0.0
        %1975 = vmatpush1.msra.mxu0 0.0
        %1976 = vmatprep.subr.mxu0 0.0
        %1977 = vmatpush1.msra.mxu0 0.0
        %1978 = vmatprep.subr.mxu0 0.0
        %1979 = vmatpush1.msra.mxu0 0.0
        %1980 = vmatprep.subr.mxu0 0.0
        %1981 = vmatpush1.msra.mxu0 0.0
        %1982 = vmatprep.subr.mxu0 0.0
        %1983 = vmatpush1.msra.mxu0 0.0
        %1984 = vmatprep.subr.mxu0 0.0
        %1985 = vmatpush1.msra.mxu0 0.0
        %1986 = vmatprep.subr.mxu0 0.0
        %1987 = vmatpush1.msra.mxu0 0.0
        %1988 = vmatprep.subr.mxu0 0.0
        %1989 = vmatpush1.msra.mxu0 0.0
        %1990 = vmatprep.subr.mxu0 0.0
        %1991 = vmatpush1.msra.mxu0 0.0
        %1992 = vmatprep.subr.mxu0 0.0
        %1993 = vmatpush1.msra.mxu0 0.0
        %1994 = vmatprep.subr.mxu0 0.0
        %1995 = vmatpush1.msra.mxu0 0.0
        %1996 = vmatprep.subr.mxu0 0.0
        %1997 = vmatpush1.msra.mxu0 0.0
        %1998 = vmatprep.subr.mxu0 0.0
        %1999 = vmatpush1.msra.mxu0 0.0
        %2000 = vmatprep.subr.mxu0 0.0
        %2001 = vmatpush1.msra.mxu0 0.0
        %2002 = vmatprep.subr.mxu0 0.0
        %v2003 = vand.u32 %v1721, 4294901760
        %2004 = vmatpush1.msra.mxu0 %v2003
        %2005 = vmatprep.subr.mxu0 0.0
        %2006 = vmatpush2.msra.mxu0 0.0
        %2007 = vmatprep.subr.mxu0 0.0
        %2008 = vmatpush2.msra.mxu0 0.0
        %2009 = vmatprep.subr.mxu0 0.0
        %2010 = vmatpush2.msra.mxu0 0.0
        %2011 = vmatprep.subr.mxu0 0.0
        %2012 = vmatpush2.msra.mxu0 0.0
        %2013 = vmatprep.subr.mxu0 0.0
        %2014 = vmatpush2.msra.mxu0 0.0
        %2015 = vmatprep.subr.mxu0 0.0
        %2016 = vmatpush2.msra.mxu0 0.0
        %2017 = vmatprep.subr.mxu0 0.0
        %2018 = vmatpush2.msra.mxu0 0.0
        %2019 = vmatprep.subr.mxu0 0.0
        %2020 = vmatpush2.msra.mxu0 0.0
        %2021 = vmatprep.subr.mxu0 0.0
        %2022 = vmatpush2.msra.mxu0 0.0
        %2023 = vmatprep.subr.mxu0 0.0
        %2024 = vmatpush2.msra.mxu0 0.0
        %2025 = vmatprep.subr.mxu0 0.0
        %2026 = vmatpush2.msra.mxu0 0.0
        %2027 = vmatprep.subr.mxu0 0.0
        %2028 = vmatpush2.msra.mxu0 0.0
        %2029 = vmatprep.subr.mxu0 0.0
        %2030 = vmatpush2.msra.mxu0 0.0
        %2031 = vmatprep.subr.mxu0 0.0
        %2032 = vmatpush2.msra.mxu0 0.0
        %2033 = vmatprep.subr.mxu0 0.0
        %2034 = vmatpush2.msra.mxu0 0.0
        %2035 = vmatprep.subr.mxu0 0.0
        %2036 = vmatpush2.msra.mxu0 0.0
        %2037 = vmatprep.mubr.f32.mxu0 0.0
        %v2038 = vand.u32 %v758, 4294901760
        %v2039 = vsub.f32 %v758, %v2038
        %v2040 = vand.u32 %v2039, 4294901760
        %2041 = vmatmul.mubr.f32.gmra.mxu0 %v2040
        %v2042 = vpop.f32.mrf.mxu0
        %v2043 = vadd.f32 %v1962, %v2042
        %v2044 = vpop.f32.mrf.mxu0
        %2045 = vmatprep.mubr.f32.mxu0 0.0
        %v2046 = vand.u32 %v761, 4294901760
        %v2047 = vsub.f32 %v761, %v2046
        %v2048 = vand.u32 %v2047, 4294901760
        %2049 = vmatmul.mubr.f32.gmra.mxu0 %v2048
        %v2050 = vpop.f32.mrf.mxu0
        %v2051 = vadd.f32 %v1969, %v2050
        %v2052 = vpop.f32.mrf.mxu0
        %2053 = vdwg.mxu0
        %2054 = vmatprep.subr.mxu0 0.0
        %2055 = vmatpush1.msra.mxu0 0.0
        %2056 = vmatprep.subr.mxu0 0.0
        %2057 = vmatpush1.msra.mxu0 0.0
        %2058 = vmatprep.subr.mxu0 0.0
        %2059 = vmatpush1.msra.mxu0 0.0
        %2060 = vmatprep.subr.mxu0 0.0
        %2061 = vmatpush1.msra.mxu0 0.0
        %2062 = vmatprep.subr.mxu0 0.0
        %2063 = vmatpush1.msra.mxu0 0.0
        %2064 = vmatprep.subr.mxu0 0.0
        %2065 = vmatpush1.msra.mxu0 0.0
        %2066 = vmatprep.subr.mxu0 0.0
        %2067 = vmatpush1.msra.mxu0 0.0
        %2068 = vmatprep.subr.mxu0 0.0
        %2069 = vmatpush1.msra.mxu0 0.0
        %2070 = vmatprep.subr.mxu0 0.0
        %2071 = vmatpush1.msra.mxu0 0.0
        %2072 = vmatprep.subr.mxu0 0.0
        %2073 = vmatpush1.msra.mxu0 0.0
        %2074 = vmatprep.subr.mxu0 0.0
        %2075 = vmatpush1.msra.mxu0 0.0
        %2076 = vmatprep.subr.mxu0 0.0
        %2077 = vmatpush1.msra.mxu0 0.0
        %2078 = vmatprep.subr.mxu0 0.0
        %2079 = vmatpush1.msra.mxu0 0.0
        %2080 = vmatprep.subr.mxu0 0.0
        %2081 = vmatpush1.msra.mxu0 0.0
        %2082 = vmatprep.subr.mxu0 0.0
        %2083 = vmatpush1.msra.mxu0 0.0
        %2084 = vmatprep.subr.mxu0 0.0
        %v2085 = vand.u32 %v1721, 4294901760
        %v2086 = vsub.f32 %v1721, %v2085
        %v2087 = vand.u32 %v2086, 4294901760
        %2088 = vmatpush1.msra.mxu0 %v2087
        %2089 = vmatprep.subr.mxu0 0.0
        %2090 = vmatpush2.msra.mxu0 0.0
        %2091 = vmatprep.subr.mxu0 0.0
        %2092 = vmatpush2.msra.mxu0 0.0
        %2093 = vmatprep.subr.mxu0 0.0
        %2094 = vmatpush2.msra.mxu0 0.0
        %2095 = vmatprep.subr.mxu0 0.0
        %2096 = vmatpush2.msra.mxu0 0.0
        %2097 = vmatprep.subr.mxu0 0.0
        %2098 = vmatpush2.msra.mxu0 0.0
        %2099 = vmatprep.subr.mxu0 0.0
        %2100 = vmatpush2.msra.mxu0 0.0
        %2101 = vmatprep.subr.mxu0 0.0
        %2102 = vmatpush2.msra.mxu0 0.0
        %2103 = vmatprep.subr.mxu0 0.0
        %2104 = vmatpush2.msra.mxu0 0.0
        %2105 = vmatprep.subr.mxu0 0.0
        %2106 = vmatpush2.msra.mxu0 0.0
        %2107 = vmatprep.subr.mxu0 0.0
        %2108 = vmatpush2.msra.mxu0 0.0
        %2109 = vmatprep.subr.mxu0 0.0
        %2110 = vmatpush2.msra.mxu0 0.0
        %2111 = vmatprep.subr.mxu0 0.0
        %2112 = vmatpush2.msra.mxu0 0.0
        %2113 = vmatprep.subr.mxu0 0.0
        %2114 = vmatpush2.msra.mxu0 0.0
        %2115 = vmatprep.subr.mxu0 0.0
        %2116 = vmatpush2.msra.mxu0 0.0
        %2117 = vmatprep.subr.mxu0 0.0
        %2118 = vmatpush2.msra.mxu0 0.0
        %2119 = vmatprep.subr.mxu0 0.0
        %2120 = vmatpush2.msra.mxu0 0.0
        %2121 = vmatprep.mubr.f32.mxu0 0.0
        %v2122 = vand.u32 %v758, 4294901760
        %2123 = vmatmul.mubr.f32.gmra.mxu0 %v2122
        %v2124 = vpop.f32.mrf.mxu0
        %v2125 = vadd.f32 %v2043, %v2124
        %v2126 = vpop.f32.mrf.mxu0
        %2127 = vmatprep.mubr.f32.mxu0 0.0
        %v2128 = vand.u32 %v761, 4294901760
        %2129 = vmatmul.mubr.f32.gmra.mxu0 %v2128
        %v2130 = vpop.f32.mrf.mxu0
        %v2131 = vadd.f32 %v2051, %v2130
        %v2132 = vpop.f32.mrf.mxu0
        %2133 = vdwg.mxu0
        %2134 = vmatprep.subr.mxu0 0.0
        %2135 = vmatpush1.msra.mxu0 0.0
        %2136 = vmatprep.subr.mxu0 0.0
        %2137 = vmatpush1.msra.mxu0 0.0
        %2138 = vmatprep.subr.mxu0 0.0
        %2139 = vmatpush1.msra.mxu0 0.0
        %2140 = vmatprep.subr.mxu0 0.0
        %2141 = vmatpush1.msra.mxu0 0.0
        %2142 = vmatprep.subr.mxu0 0.0
        %2143 = vmatpush1.msra.mxu0 0.0
        %2144 = vmatprep.subr.mxu0 0.0
        %2145 = vmatpush1.msra.mxu0 0.0
        %2146 = vmatprep.subr.mxu0 0.0
        %2147 = vmatpush1.msra.mxu0 0.0
        %2148 = vmatprep.subr.mxu0 0.0
        %2149 = vmatpush1.msra.mxu0 0.0
        %2150 = vmatprep.subr.mxu0 0.0
        %2151 = vmatpush1.msra.mxu0 0.0
        %2152 = vmatprep.subr.mxu0 0.0
        %2153 = vmatpush1.msra.mxu0 0.0
        %2154 = vmatprep.subr.mxu0 0.0
        %2155 = vmatpush1.msra.mxu0 0.0
        %2156 = vmatprep.subr.mxu0 0.0
        %2157 = vmatpush1.msra.mxu0 0.0
        %2158 = vmatprep.subr.mxu0 0.0
        %2159 = vmatpush1.msra.mxu0 0.0
        %2160 = vmatprep.subr.mxu0 0.0
        %2161 = vmatpush1.msra.mxu0 0.0
        %2162 = vmatprep.subr.mxu0 0.0
        %2163 = vmatpush1.msra.mxu0 0.0
        %2164 = vmatprep.subr.mxu0 0.0
        %v2165 = vand.u32 %v1721, 4294901760
        %2166 = vmatpush1.msra.mxu0 %v2165
        %2167 = vmatprep.subr.mxu0 0.0
        %2168 = vmatpush2.msra.mxu0 0.0
        %2169 = vmatprep.subr.mxu0 0.0
        %2170 = vmatpush2.msra.mxu0 0.0
        %2171 = vmatprep.subr.mxu0 0.0
        %2172 = vmatpush2.msra.mxu0 0.0
        %2173 = vmatprep.subr.mxu0 0.0
        %2174 = vmatpush2.msra.mxu0 0.0
        %2175 = vmatprep.subr.mxu0 0.0
        %2176 = vmatpush2.msra.mxu0 0.0
        %2177 = vmatprep.subr.mxu0 0.0
        %2178 = vmatpush2.msra.mxu0 0.0
        %2179 = vmatprep.subr.mxu0 0.0
        %2180 = vmatpush2.msra.mxu0 0.0
        %2181 = vmatprep.subr.mxu0 0.0
        %2182 = vmatpush2.msra.mxu0 0.0
        %2183 = vmatprep.subr.mxu0 0.0
        %2184 = vmatpush2.msra.mxu0 0.0
        %2185 = vmatprep.subr.mxu0 0.0
        %2186 = vmatpush2.msra.mxu0 0.0
        %2187 = vmatprep.subr.mxu0 0.0
        %2188 = vmatpush2.msra.mxu0 0.0
        %2189 = vmatprep.subr.mxu0 0.0
        %2190 = vmatpush2.msra.mxu0 0.0
        %2191 = vmatprep.subr.mxu0 0.0
        %2192 = vmatpush2.msra.mxu0 0.0
        %2193 = vmatprep.subr.mxu0 0.0
        %2194 = vmatpush2.msra.mxu0 0.0
        %2195 = vmatprep.subr.mxu0 0.0
        %2196 = vmatpush2.msra.mxu0 0.0
        %2197 = vmatprep.subr.mxu0 0.0
        %2198 = vmatpush2.msra.mxu0 0.0
        %2199 = vmatprep.mubr.f32.mxu0 0.0
        %v2200 = vand.u32 %v758, 4294901760
        %2201 = vmatmul.mubr.f32.gmra.mxu0 %v2200
        %v2202 = vpop.f32.mrf.mxu0
        %v2203 = vadd.f32 %v2125, %v2202
        %v2204 = vpop.f32.mrf.mxu0
        %2205 = vmatprep.mubr.f32.mxu0 0.0
        %v2206 = vand.u32 %v761, 4294901760
        %2207 = vmatmul.mubr.f32.gmra.mxu0 %v2206
        %v2208 = vpop.f32.mrf.mxu0
        %v2209 = vadd.f32 %v2131, %v2208
        %v2210 = vpop.f32.mrf.mxu0
        %2211 = vdwg.mxu0
        %v2212 = vmul.f32 %v1256, %v2203
        %v2213 = vmul.f32 %v1257, %v2209
        %v2214 = vpack.c.bf16 %v2213, %v2212
        %v2215 = vld [vmem:[%s3] sm:$0xf]
        %v2216 = vld [vmem:[%s4] sm:$0xff]
        %v2218 = vsel %vm293, %v2216, 0
        %2220 = vmatprep.subr.mxu0 0.0
        %2221 = vmatpush1.msra.mxu0 0.0
        %2222 = vmatprep.subr.mxu0 0.0
        %2223 = vmatpush1.msra.mxu0 0.0
        %2224 = vmatprep.subr.mxu0 0.0
        %2225 = vmatpush1.msra.mxu0 0.0
        %2226 = vmatprep.subr.mxu0 0.0
        %2227 = vmatpush1.msra.mxu0 0.0
        %2228 = vmatprep.subr.mxu0 0.0
        %2229 = vmatpush1.msra.mxu0 0.0
        %2230 = vmatprep.subr.mxu0 0.0
        %2231 = vmatpush1.msra.mxu0 0.0
        %2232 = vmatprep.subr.mxu0 0.0
        %2233 = vmatpush1.msra.mxu0 0.0
        %2234 = vmatprep.subr.mxu0 0.0
        %2235 = vmatpush1.msra.mxu0 0.0
        %2236 = vmatprep.subr.mxu0 0.0
        %2237 = vmatpush1.msra.mxu0 0.0
        %2238 = vmatprep.subr.mxu0 0.0
        %2239 = vmatpush1.msra.mxu0 0.0
        %2240 = vmatprep.subr.mxu0 0.0
        %2241 = vmatpush1.msra.mxu0 0.0
        %2242 = vmatprep.subr.mxu0 0.0
        %2243 = vmatpush1.msra.mxu0 0.0
        %2244 = vmatprep.subr.mxu0 0.0
        %2245 = vmatpush1.msra.mxu0 0.0
        %2246 = vmatprep.subr.mxu0 0.0
        %2247 = vmatpush1.msra.mxu0 0.0
        %2248 = vmatprep.subr.mxu0 0.0
        %v2249 = vand.u32 %v289, 4294901760
        %2250 = vmatpush1.msra.mxu0 %v2249
        %2251 = vmatprep.subr.mxu0 0.0
        %v2252 = vand.u32 %v288, 4294901760
        %2253 = vmatpush1.msra.mxu0 %v2252
        %2254 = vmatprep.subr.mxu0 0.0
        %2255 = vmatpush2.msra.mxu0 0.0
        %2256 = vmatprep.subr.mxu0 0.0
        %2257 = vmatpush2.msra.mxu0 0.0
        %2258 = vmatprep.subr.mxu0 0.0
        %2259 = vmatpush2.msra.mxu0 0.0
        %2260 = vmatprep.subr.mxu0 0.0
        %2261 = vmatpush2.msra.mxu0 0.0
        %2262 = vmatprep.subr.mxu0 0.0
        %2263 = vmatpush2.msra.mxu0 0.0
        %2264 = vmatprep.subr.mxu0 0.0
        %2265 = vmatpush2.msra.mxu0 0.0
        %2266 = vmatprep.subr.mxu0 0.0
        %2267 = vmatpush2.msra.mxu0 0.0
        %2268 = vmatprep.subr.mxu0 0.0
        %2269 = vmatpush2.msra.mxu0 0.0
        %2270 = vmatprep.subr.mxu0 0.0
        %2271 = vmatpush2.msra.mxu0 0.0
        %2272 = vmatprep.subr.mxu0 0.0
        %2273 = vmatpush2.msra.mxu0 0.0
        %2274 = vmatprep.subr.mxu0 0.0
        %2275 = vmatpush2.msra.mxu0 0.0
        %2276 = vmatprep.subr.mxu0 0.0
        %2277 = vmatpush2.msra.mxu0 0.0
        %2278 = vmatprep.subr.mxu0 0.0
        %2279 = vmatpush2.msra.mxu0 0.0
        %2280 = vmatprep.subr.mxu0 0.0
        %2281 = vmatpush2.msra.mxu0 0.0
        %2282 = vmatprep.subr.mxu0 0.0
        %2283 = vmatpush2.msra.mxu0 0.0
        %2284 = vmatprep.subr.mxu0 0.0
        %2285 = vmatpush2.msra.mxu0 0.0
        %2286 = vmatprep.mubr.f32.mxu0 0.0
        %v2287 = vand.u32 %v2218, 4294901760
        %v2288 = vsub.f32 %v2218, %v2287
        %v2289 = vand.u32 %v2288, 4294901760
        %v2290 = vsub.f32 %v2288, %v2289
        %v2291 = vand.u32 %v2290, 4294901760
        %2292 = vmatmul.mubr.f32.gmra.mxu0 %v2291
        %v2293 = vpop.f32.mrf.mxu0
        %v2294 = vadd.f32 0.0, %v2293
        %v2295 = vpop.f32.mrf.mxu0
        %2296 = vdwg.mxu0
        %2297 = vmatprep.subr.mxu0 0.0
        %2298 = vmatpush1.msra.mxu0 0.0
        %2299 = vmatprep.subr.mxu0 0.0
        %2300 = vmatpush1.msra.mxu0 0.0
        %2301 = vmatprep.subr.mxu0 0.0
        %2302 = vmatpush1.msra.mxu0 0.0
        %2303 = vmatprep.subr.mxu0 0.0
        %2304 = vmatpush1.msra.mxu0 0.0
        %2305 = vmatprep.subr.mxu0 0.0
        %2306 = vmatpush1.msra.mxu0 0.0
        %2307 = vmatprep.subr.mxu0 0.0
        %2308 = vmatpush1.msra.mxu0 0.0
        %2309 = vmatprep.subr.mxu0 0.0
        %2310 = vmatpush1.msra.mxu0 0.0
        %2311 = vmatprep.subr.mxu0 0.0
        %2312 = vmatpush1.msra.mxu0 0.0
        %2313 = vmatprep.subr.mxu0 0.0
        %2314 = vmatpush1.msra.mxu0 0.0
        %2315 = vmatprep.subr.mxu0 0.0
        %2316 = vmatpush1.msra.mxu0 0.0
        %2317 = vmatprep.subr.mxu0 0.0
        %2318 = vmatpush1.msra.mxu0 0.0
        %2319 = vmatprep.subr.mxu0 0.0
        %2320 = vmatpush1.msra.mxu0 0.0
        %2321 = vmatprep.subr.mxu0 0.0
        %2322 = vmatpush1.msra.mxu0 0.0
        %2323 = vmatprep.subr.mxu0 0.0
        %2324 = vmatpush1.msra.mxu0 0.0
        %2325 = vmatprep.subr.mxu0 0.0
        %v2326 = vand.u32 %v289, 4294901760
        %v2327 = vsub.f32 %v289, %v2326
        %v2328 = vand.u32 %v2327, 4294901760
        %v2329 = vsub.f32 %v2327, %v2328
        %v2330 = vand.u32 %v2329, 4294901760
        %2331 = vmatpush1.msra.mxu0 %v2330
        %2332 = vmatprep.subr.mxu0 0.0
        %v2333 = vand.u32 %v288, 4294901760
        %v2334 = vsub.f32 %v288, %v2333
        %v2335 = vand.u32 %v2334, 4294901760
        %v2336 = vsub.f32 %v2334, %v2335
        %v2337 = vand.u32 %v2336, 4294901760
        %2338 = vmatpush1.msra.mxu0 %v2337
        %2339 = vmatprep.subr.mxu0 0.0
        %2340 = vmatpush2.msra.mxu0 0.0
        %2341 = vmatprep.subr.mxu0 0.0
        %2342 = vmatpush2.msra.mxu0 0.0
        %2343 = vmatprep.subr.mxu0 0.0
        %2344 = vmatpush2.msra.mxu0 0.0
        %2345 = vmatprep.subr.mxu0 0.0
        %2346 = vmatpush2.msra.mxu0 0.0
        %2347 = vmatprep.subr.mxu0 0.0
        %2348 = vmatpush2.msra.mxu0 0.0
        %2349 = vmatprep.subr.mxu0 0.0
        %2350 = vmatpush2.msra.mxu0 0.0
        %2351 = vmatprep.subr.mxu0 0.0
        %2352 = vmatpush2.msra.mxu0 0.0
        %2353 = vmatprep.subr.mxu0 0.0
        %2354 = vmatpush2.msra.mxu0 0.0
        %2355 = vmatprep.subr.mxu0 0.0
        %2356 = vmatpush2.msra.mxu0 0.0
        %2357 = vmatprep.subr.mxu0 0.0
        %2358 = vmatpush2.msra.mxu0 0.0
        %2359 = vmatprep.subr.mxu0 0.0
        %2360 = vmatpush2.msra.mxu0 0.0
        %2361 = vmatprep.subr.mxu0 0.0
        %2362 = vmatpush2.msra.mxu0 0.0
        %2363 = vmatprep.subr.mxu0 0.0
        %2364 = vmatpush2.msra.mxu0 0.0
        %2365 = vmatprep.subr.mxu0 0.0
        %2366 = vmatpush2.msra.mxu0 0.0
        %2367 = vmatprep.subr.mxu0 0.0
        %2368 = vmatpush2.msra.mxu0 0.0
        %2369 = vmatprep.subr.mxu0 0.0
        %2370 = vmatpush2.msra.mxu0 0.0
        %2371 = vmatprep.mubr.f32.mxu0 0.0
        %v2372 = vand.u32 %v2218, 4294901760
        %2373 = vmatmul.mubr.f32.gmra.mxu0 %v2372
        %v2374 = vpop.f32.mrf.mxu0
        %v2375 = vadd.f32 %v2294, %v2374
        %v2376 = vpop.f32.mrf.mxu0
        %2377 = vdwg.mxu0
        %2378 = vmatprep.subr.mxu0 0.0
        %2379 = vmatpush1.msra.mxu0 0.0
        %2380 = vmatprep.subr.mxu0 0.0
        %2381 = vmatpush1.msra.mxu0 0.0
        %2382 = vmatprep.subr.mxu0 0.0
        %2383 = vmatpush1.msra.mxu0 0.0
        %2384 = vmatprep.subr.mxu0 0.0
        %2385 = vmatpush1.msra.mxu0 0.0
        %2386 = vmatprep.subr.mxu0 0.0
        %2387 = vmatpush1.msra.mxu0 0.0
        %2388 = vmatprep.subr.mxu0 0.0
        %2389 = vmatpush1.msra.mxu0 0.0
        %2390 = vmatprep.subr.mxu0 0.0
        %2391 = vmatpush1.msra.mxu0 0.0
        %2392 = vmatprep.subr.mxu0 0.0
        %2393 = vmatpush1.msra.mxu0 0.0
        %2394 = vmatprep.subr.mxu0 0.0
        %2395 = vmatpush1.msra.mxu0 0.0
        %2396 = vmatprep.subr.mxu0 0.0
        %2397 = vmatpush1.msra.mxu0 0.0
        %2398 = vmatprep.subr.mxu0 0.0
        %2399 = vmatpush1.msra.mxu0 0.0
        %2400 = vmatprep.subr.mxu0 0.0
        %2401 = vmatpush1.msra.mxu0 0.0
        %2402 = vmatprep.subr.mxu0 0.0
        %2403 = vmatpush1.msra.mxu0 0.0
        %2404 = vmatprep.subr.mxu0 0.0
        %2405 = vmatpush1.msra.mxu0 0.0
        %2406 = vmatprep.subr.mxu0 0.0
        %v2407 = vand.u32 %v289, 4294901760
        %v2408 = vsub.f32 %v289, %v2407
        %2409 = vmatpush1.msra.mxu0 %v2408
        %2410 = vmatprep.subr.mxu0 0.0
        %v2411 = vand.u32 %v288, 4294901760
        %v2412 = vsub.f32 %v288, %v2411
        %2413 = vmatpush1.msra.mxu0 %v2412
        %2414 = vmatprep.subr.mxu0 0.0
        %2415 = vmatpush2.msra.mxu0 0.0
        %2416 = vmatprep.subr.mxu0 0.0
        %2417 = vmatpush2.msra.mxu0 0.0
        %2418 = vmatprep.subr.mxu0 0.0
        %2419 = vmatpush2.msra.mxu0 0.0
        %2420 = vmatprep.subr.mxu0 0.0
        %2421 = vmatpush2.msra.mxu0 0.0
        %2422 = vmatprep.subr.mxu0 0.0
        %2423 = vmatpush2.msra.mxu0 0.0
        %2424 = vmatprep.subr.mxu0 0.0
        %2425 = vmatpush2.msra.mxu0 0.0
        %2426 = vmatprep.subr.mxu0 0.0
        %2427 = vmatpush2.msra.mxu0 0.0
        %2428 = vmatprep.subr.mxu0 0.0
        %2429 = vmatpush2.msra.mxu0 0.0
        %2430 = vmatprep.subr.mxu0 0.0
        %2431 = vmatpush2.msra.mxu0 0.0
        %2432 = vmatprep.subr.mxu0 0.0
        %2433 = vmatpush2.msra.mxu0 0.0
        %2434 = vmatprep.subr.mxu0 0.0
        %2435 = vmatpush2.msra.mxu0 0.0
        %2436 = vmatprep.subr.mxu0 0.0
        %2437 = vmatpush2.msra.mxu0 0.0
        %2438 = vmatprep.subr.mxu0 0.0
        %2439 = vmatpush2.msra.mxu0 0.0
        %2440 = vmatprep.subr.mxu0 0.0
        %2441 = vmatpush2.msra.mxu0 0.0
        %2442 = vmatprep.subr.mxu0 0.0
        %2443 = vmatpush2.msra.mxu0 0.0
        %2444 = vmatprep.subr.mxu0 0.0
        %2445 = vmatpush2.msra.mxu0 0.0
        %2446 = vmatprep.mubr.f32.mxu0 0.0
        %v2447 = vand.u32 %v2218, 4294901760
        %v2448 = vsub.f32 %v2218, %v2447
        %2449 = vmatmul.mubr.f32.gmra.mxu0 %v2448
        %v2450 = vpop.f32.mrf.mxu0
        %v2451 = vadd.f32 %v2375, %v2450
        %v2452 = vpop.f32.mrf.mxu0
        %2453 = vdwg.mxu0
        %2454 = vmatprep.subr.mxu0 0.0
        %2455 = vmatpush1.msra.mxu0 0.0
        %2456 = vmatprep.subr.mxu0 0.0
        %2457 = vmatpush1.msra.mxu0 0.0
        %2458 = vmatprep.subr.mxu0 0.0
        %2459 = vmatpush1.msra.mxu0 0.0
        %2460 = vmatprep.subr.mxu0 0.0
        %2461 = vmatpush1.msra.mxu0 0.0
        %2462 = vmatprep.subr.mxu0 0.0
        %2463 = vmatpush1.msra.mxu0 0.0
        %2464 = vmatprep.subr.mxu0 0.0
        %2465 = vmatpush1.msra.mxu0 0.0
        %2466 = vmatprep.subr.mxu0 0.0
        %2467 = vmatpush1.msra.mxu0 0.0
        %2468 = vmatprep.subr.mxu0 0.0
        %2469 = vmatpush1.msra.mxu0 0.0
        %2470 = vmatprep.subr.mxu0 0.0
        %2471 = vmatpush1.msra.mxu0 0.0
        %2472 = vmatprep.subr.mxu0 0.0
        %2473 = vmatpush1.msra.mxu0 0.0
        %2474 = vmatprep.subr.mxu0 0.0
        %2475 = vmatpush1.msra.mxu0 0.0
        %2476 = vmatprep.subr.mxu0 0.0
        %2477 = vmatpush1.msra.mxu0 0.0
        %2478 = vmatprep.subr.mxu0 0.0
        %2479 = vmatpush1.msra.mxu0 0.0
        %2480 = vmatprep.subr.mxu0 0.0
        %2481 = vmatpush1.msra.mxu0 0.0
        %2482 = vmatprep.subr.mxu0 0.0
        %v2483 = vand.u32 %v289, 4294901760
        %2484 = vmatpush1.msra.mxu0 %v2483
        %2485 = vmatprep.subr.mxu0 0.0
        %v2486 = vand.u32 %v288, 4294901760
        %2487 = vmatpush1.msra.mxu0 %v2486
        %2488 = vmatprep.subr.mxu0 0.0
        %2489 = vmatpush2.msra.mxu0 0.0
        %2490 = vmatprep.subr.mxu0 0.0
        %2491 = vmatpush2.msra.mxu0 0.0
        %2492 = vmatprep.subr.mxu0 0.0
        %2493 = vmatpush2.msra.mxu0 0.0
        %2494 = vmatprep.subr.mxu0 0.0
        %2495 = vmatpush2.msra.mxu0 0.0
        %2496 = vmatprep.subr.mxu0 0.0
        %2497 = vmatpush2.msra.mxu0 0.0
        %2498 = vmatprep.subr.mxu0 0.0
        %2499 = vmatpush2.msra.mxu0 0.0
        %2500 = vmatprep.subr.mxu0 0.0
        %2501 = vmatpush2.msra.mxu0 0.0
        %2502 = vmatprep.subr.mxu0 0.0
        %2503 = vmatpush2.msra.mxu0 0.0
        %2504 = vmatprep.subr.mxu0 0.0
        %2505 = vmatpush2.msra.mxu0 0.0
        %2506 = vmatprep.subr.mxu0 0.0
        %2507 = vmatpush2.msra.mxu0 0.0
        %2508 = vmatprep.subr.mxu0 0.0
        %2509 = vmatpush2.msra.mxu0 0.0
        %2510 = vmatprep.subr.mxu0 0.0
        %2511 = vmatpush2.msra.mxu0 0.0
        %2512 = vmatprep.subr.mxu0 0.0
        %2513 = vmatpush2.msra.mxu0 0.0
        %2514 = vmatprep.subr.mxu0 0.0
        %2515 = vmatpush2.msra.mxu0 0.0
        %2516 = vmatprep.subr.mxu0 0.0
        %2517 = vmatpush2.msra.mxu0 0.0
        %2518 = vmatprep.subr.mxu0 0.0
        %2519 = vmatpush2.msra.mxu0 0.0
        %2520 = vmatprep.mubr.f32.mxu0 0.0
        %v2521 = vand.u32 %v2218, 4294901760
        %v2522 = vsub.f32 %v2218, %v2521
        %v2523 = vand.u32 %v2522, 4294901760
        %2524 = vmatmul.mubr.f32.gmra.mxu0 %v2523
        %v2525 = vpop.f32.mrf.mxu0
        %v2526 = vadd.f32 %v2451, %v2525
        %v2527 = vpop.f32.mrf.mxu0
        %2528 = vdwg.mxu0
        %2529 = vmatprep.subr.mxu0 0.0
        %2530 = vmatpush1.msra.mxu0 0.0
        %2531 = vmatprep.subr.mxu0 0.0
        %2532 = vmatpush1.msra.mxu0 0.0
        %2533 = vmatprep.subr.mxu0 0.0
        %2534 = vmatpush1.msra.mxu0 0.0
        %2535 = vmatprep.subr.mxu0 0.0
        %2536 = vmatpush1.msra.mxu0 0.0
        %2537 = vmatprep.subr.mxu0 0.0
        %2538 = vmatpush1.msra.mxu0 0.0
        %2539 = vmatprep.subr.mxu0 0.0
        %2540 = vmatpush1.msra.mxu0 0.0
        %2541 = vmatprep.subr.mxu0 0.0
        %2542 = vmatpush1.msra.mxu0 0.0
        %2543 = vmatprep.subr.mxu0 0.0
        %2544 = vmatpush1.msra.mxu0 0.0
        %2545 = vmatprep.subr.mxu0 0.0
        %2546 = vmatpush1.msra.mxu0 0.0
        %2547 = vmatprep.subr.mxu0 0.0
        %2548 = vmatpush1.msra.mxu0 0.0
        %2549 = vmatprep.subr.mxu0 0.0
        %2550 = vmatpush1.msra.mxu0 0.0
        %2551 = vmatprep.subr.mxu0 0.0
        %2552 = vmatpush1.msra.mxu0 0.0
        %2553 = vmatprep.subr.mxu0 0.0
        %2554 = vmatpush1.msra.mxu0 0.0
        %2555 = vmatprep.subr.mxu0 0.0
        %2556 = vmatpush1.msra.mxu0 0.0
        %2557 = vmatprep.subr.mxu0 0.0
        %v2558 = vand.u32 %v289, 4294901760
        %v2559 = vsub.f32 %v289, %v2558
        %v2560 = vand.u32 %v2559, 4294901760
        %2561 = vmatpush1.msra.mxu0 %v2560
        %2562 = vmatprep.subr.mxu0 0.0
        %v2563 = vand.u32 %v288, 4294901760
        %v2564 = vsub.f32 %v288, %v2563
        %v2565 = vand.u32 %v2564, 4294901760
        %2566 = vmatpush1.msra.mxu0 %v2565
        %2567 = vmatprep.subr.mxu0 0.0
        %2568 = vmatpush2.msra.mxu0 0.0
        %2569 = vmatprep.subr.mxu0 0.0
        %2570 = vmatpush2.msra.mxu0 0.0
        %2571 = vmatprep.subr.mxu0 0.0
        %2572 = vmatpush2.msra.mxu0 0.0
        %2573 = vmatprep.subr.mxu0 0.0
        %2574 = vmatpush2.msra.mxu0 0.0
        %2575 = vmatprep.subr.mxu0 0.0
        %2576 = vmatpush2.msra.mxu0 0.0
        %2577 = vmatprep.subr.mxu0 0.0
        %2578 = vmatpush2.msra.mxu0 0.0
        %2579 = vmatprep.subr.mxu0 0.0
        %2580 = vmatpush2.msra.mxu0 0.0
        %2581 = vmatprep.subr.mxu0 0.0
        %2582 = vmatpush2.msra.mxu0 0.0
        %2583 = vmatprep.subr.mxu0 0.0
        %2584 = vmatpush2.msra.mxu0 0.0
        %2585 = vmatprep.subr.mxu0 0.0
        %2586 = vmatpush2.msra.mxu0 0.0
        %2587 = vmatprep.subr.mxu0 0.0
        %2588 = vmatpush2.msra.mxu0 0.0
        %2589 = vmatprep.subr.mxu0 0.0
        %2590 = vmatpush2.msra.mxu0 0.0
        %2591 = vmatprep.subr.mxu0 0.0
        %2592 = vmatpush2.msra.mxu0 0.0
        %2593 = vmatprep.subr.mxu0 0.0
        %2594 = vmatpush2.msra.mxu0 0.0
        %2595 = vmatprep.subr.mxu0 0.0
        %2596 = vmatpush2.msra.mxu0 0.0
        %2597 = vmatprep.subr.mxu0 0.0
        %2598 = vmatpush2.msra.mxu0 0.0
        %2599 = vmatprep.mubr.f32.mxu0 0.0
        %v2600 = vand.u32 %v2218, 4294901760
        %2601 = vmatmul.mubr.f32.gmra.mxu0 %v2600
        %v2602 = vpop.f32.mrf.mxu0
        %v2603 = vadd.f32 %v2526, %v2602
        %v2604 = vpop.f32.mrf.mxu0
        %2605 = vdwg.mxu0
        %2606 = vmatprep.subr.mxu0 0.0
        %2607 = vmatpush1.msra.mxu0 0.0
        %2608 = vmatprep.subr.mxu0 0.0
        %2609 = vmatpush1.msra.mxu0 0.0
        %2610 = vmatprep.subr.mxu0 0.0
        %2611 = vmatpush1.msra.mxu0 0.0
        %2612 = vmatprep.subr.mxu0 0.0
        %2613 = vmatpush1.msra.mxu0 0.0
        %2614 = vmatprep.subr.mxu0 0.0
        %2615 = vmatpush1.msra.mxu0 0.0
        %2616 = vmatprep.subr.mxu0 0.0
        %2617 = vmatpush1.msra.mxu0 0.0
        %2618 = vmatprep.subr.mxu0 0.0
        %2619 = vmatpush1.msra.mxu0 0.0
        %2620 = vmatprep.subr.mxu0 0.0
        %2621 = vmatpush1.msra.mxu0 0.0
        %2622 = vmatprep.subr.mxu0 0.0
        %2623 = vmatpush1.msra.mxu0 0.0
        %2624 = vmatprep.subr.mxu0 0.0
        %2625 = vmatpush1.msra.mxu0 0.0
        %2626 = vmatprep.subr.mxu0 0.0
        %2627 = vmatpush1.msra.mxu0 0.0
        %2628 = vmatprep.subr.mxu0 0.0
        %2629 = vmatpush1.msra.mxu0 0.0
        %2630 = vmatprep.subr.mxu0 0.0
        %2631 = vmatpush1.msra.mxu0 0.0
        %2632 = vmatprep.subr.mxu0 0.0
        %2633 = vmatpush1.msra.mxu0 0.0
        %2634 = vmatprep.subr.mxu0 0.0
        %v2635 = vand.u32 %v289, 4294901760
        %2636 = vmatpush1.msra.mxu0 %v2635
        %2637 = vmatprep.subr.mxu0 0.0
        %v2638 = vand.u32 %v288, 4294901760
        %2639 = vmatpush1.msra.mxu0 %v2638
        %2640 = vmatprep.subr.mxu0 0.0
        %2641 = vmatpush2.msra.mxu0 0.0
        %2642 = vmatprep.subr.mxu0 0.0
        %2643 = vmatpush2.msra.mxu0 0.0
        %2644 = vmatprep.subr.mxu0 0.0
        %2645 = vmatpush2.msra.mxu0 0.0
        %2646 = vmatprep.subr.mxu0 0.0
        %2647 = vmatpush2.msra.mxu0 0.0
        %2648 = vmatprep.subr.mxu0 0.0
        %2649 = vmatpush2.msra.mxu0 0.0
        %2650 = vmatprep.subr.mxu0 0.0
        %2651 = vmatpush2.msra.mxu0 0.0
        %2652 = vmatprep.subr.mxu0 0.0
        %2653 = vmatpush2.msra.mxu0 0.0
        %2654 = vmatprep.subr.mxu0 0.0
        %2655 = vmatpush2.msra.mxu0 0.0
        %2656 = vmatprep.subr.mxu0 0.0
        %2657 = vmatpush2.msra.mxu0 0.0
        %2658 = vmatprep.subr.mxu0 0.0
        %2659 = vmatpush2.msra.mxu0 0.0
        %2660 = vmatprep.subr.mxu0 0.0
        %2661 = vmatpush2.msra.mxu0 0.0
        %2662 = vmatprep.subr.mxu0 0.0
        %2663 = vmatpush2.msra.mxu0 0.0
        %2664 = vmatprep.subr.mxu0 0.0
        %2665 = vmatpush2.msra.mxu0 0.0
        %2666 = vmatprep.subr.mxu0 0.0
        %2667 = vmatpush2.msra.mxu0 0.0
        %2668 = vmatprep.subr.mxu0 0.0
        %2669 = vmatpush2.msra.mxu0 0.0
        %2670 = vmatprep.subr.mxu0 0.0
        %2671 = vmatpush2.msra.mxu0 0.0
        %2672 = vmatprep.mubr.f32.mxu0 0.0
        %v2673 = vand.u32 %v2218, 4294901760
        %2674 = vmatmul.mubr.f32.gmra.mxu0 %v2673
        %v2675 = vpop.f32.mrf.mxu0
        %v2676 = vadd.f32 %v2603, %v2675
        %v2677 = vpop.f32.mrf.mxu0
        %2678 = vdwg.mxu0
        %v2680 = vsel %vm293, %v2215, 0
        %2682 = vmatprep.subr.bf16.mxu0 0
        %2683 = vmatpush1.bf16.msra.mxu0 0
        %2684 = vmatprep.subr.bf16.mxu0 0
        %2685 = vmatpush1.bf16.msra.mxu0 0
        %2686 = vmatprep.subr.bf16.mxu0 0
        %2687 = vmatpush1.bf16.msra.mxu0 0
        %2688 = vmatprep.subr.bf16.mxu0 0
        %2689 = vmatpush1.bf16.msra.mxu0 0
        %2690 = vmatprep.subr.bf16.mxu0 0
        %2691 = vmatpush1.bf16.msra.mxu0 0
        %2692 = vmatprep.subr.bf16.mxu0 0
        %2693 = vmatpush1.bf16.msra.mxu0 0
        %2694 = vmatprep.subr.bf16.mxu0 0
        %2695 = vmatpush1.bf16.msra.mxu0 0
        %2696 = vmatprep.subr.bf16.mxu0 0
        %2697 = vmatpush1.bf16.msra.mxu0 %v2214
        %2698 = vmatprep.subr.bf16.mxu0 0
        %2699 = vmatpush2.bf16.msra.mxu0 0
        %2700 = vmatprep.subr.bf16.mxu0 0
        %2701 = vmatpush2.bf16.msra.mxu0 0
        %2702 = vmatprep.subr.bf16.mxu0 0
        %2703 = vmatpush2.bf16.msra.mxu0 0
        %2704 = vmatprep.subr.bf16.mxu0 0
        %2705 = vmatpush2.bf16.msra.mxu0 0
        %2706 = vmatprep.subr.bf16.mxu0 0
        %2707 = vmatpush2.bf16.msra.mxu0 0
        %2708 = vmatprep.subr.bf16.mxu0 0
        %2709 = vmatpush2.bf16.msra.mxu0 0
        %2710 = vmatprep.subr.bf16.mxu0 0
        %2711 = vmatpush2.bf16.msra.mxu0 0
        %2712 = vmatprep.subr.bf16.mxu0 0
        %2713 = vmatpush2.bf16.msra.mxu0 0
        %2714 = vmatprep.mubr.bf16.mxu0 0
        %2715 = vmatmul.mubr.bf16.gmra.mxu0 %v2680
        %v2716 = vpop.f32.mrf.mxu0
        %v2717 = vadd.f32 %v2676, %v2716
        %v2718 = vpop.f32.mrf.mxu0
        %v2719 = vpop.f32.mrf.mxu0
        %v2720 = vpop.f32.mrf.mxu0
        %2721 = vdwg.mxu0
        %v2722 = vld [vmem:[%s5] sm:$0xff]
        %2724 = vset.pattern.permute.xlu0 0
        %2725 = vperm.xlu0 %2724, %v2722
        %v2726 = vpop.permute.xlu0 %2725
        %v2728 = vadd.f32 %v2717, %v2726
        %vm2729 = vcmask 523264
        %2730 = vst.msk [vmem:[%s286] sm:$0xff] %vm2729, %v2728
        %s2731 = sand.u32 %s178, 1
        %s2732 = scalar_lea.sflag [#allocation4], %s2731
        %s2733 = sand.u32 %s178, 1
        %s2734 = smul.addr %s2733, 8
        %s2735 = scalar_lea.vmem [#allocation5], %s2734
        // Predicated region
        $region49: #{tpu_custom_call.1} parent=43 // pred_check
          %p2736 = pneg %p188
        $region50: #{tpu_custom_call.1} parent=43 // pred_check_branch
          %2738 = sbr.rel (%p2736) target = $region52
        $region51: #{tpu_custom_call.1} parent=43 // pred_region
          %s2740 = ssub.s32 128, 128
          %2741 = vsyncadd %s2732, %s2740
          %s2742 = sadd.s32 %s28, %s27
          %s2743 = smul.addr %s2742, 128
          %s2744 = scalar_lea.hbm %s6, %s2743
          %s2746 = sshll.u32 %s2735, 4
          %s2747 = int_to_ptr.vmem [resolvable:$true] %s2746
          %2749 = dma.vmem_to_hbm [thread:$0]  %s2747, 128, %s2744, %s2732
        $region52: #{tpu_custom_call.1} parent=43 // pred_fallthru
          _
      $region44: #{tpu_custom_call.1} parent=5 // pred_fallthru
        _
      %p2750 = scmp.le.s32.totalorder 2, %s18
      // Predicated region
      $region53: #{tpu_custom_call.1} parent=5 // pred_check
        %p2751 = pneg %p2750
      $region54: #{tpu_custom_call.1} parent=5 // pred_check_branch
        %2753 = sbr.rel (%p2751) target = $region56
      $region55: #{tpu_custom_call.1} parent=5 // pred_region
        %s2754 = ssub.s32 %s18, 2
        // Predicated region
        $region57: #{tpu_custom_call.1} parent=55 // pred_check
          %p2755 = pneg %p194
        $region58: #{tpu_custom_call.1} parent=55 // pred_check_branch
          %2757 = sbr.rel (%p2755) target = $region60
        $region59: #{tpu_custom_call.1} parent=55 // pred_region
          %s2758 = sand.u32 %s179, 1
          %s2759 = scalar_lea.sflag [#allocation4], %s2758
          %s2760 = sand.u32 %s179, 1
          %s2761 = smul.addr %s2760, 8
          %s2762 = scalar_lea.vmem [#allocation5], %s2761
          %2763 = dma.done %s2759, 128
        $region60: #{tpu_custom_call.1} parent=55 // pred_fallthru
          _
      $region56: #{tpu_custom_call.1} parent=5 // pred_fallthru
        _
    $region6: #{tpu_custom_call.1} parent=1 // loop_footer
      %s22 = sadd.s32 1, %s18
    $region7: #{tpu_custom_call.1} parent=1 // loop_footer_branch
      %17 = sbr.rel target = $region3
    $region8: #{tpu_custom_call.1} parent=1 // loop_exit
      _
    %2764 = vsyncpa [#allocation3], 1
    %s2765 = scalar_lea.sflag [#allocation3], 1
    %2766 = vsyncpa %s2765, 1
    %2767 = vsyncpa [#allocation4], 1
    %s2768 = scalar_lea.sflag [#allocation4], 1
    %2769 = vsyncpa %s2768, 1

</llo_original>
